<compile_context>
chip_gen: v6e
topology: v6e:2x2x1
jax: 0.10.0
libtpu: 0.0.40
codegen_flags: <defaults>
</compile_context>

<pallas_src>
import functools

import jax
import jax.numpy as jnp
from jax.experimental import pallas as pl
from jax.experimental.pallas import tpu as pltpu

# ----------------------------- scaled-down config -----------------------------
HIDDEN = 32
NUM_HEADS = 2
HEAD_DIM = HIDDEN // NUM_HEADS
INTERMEDIATE = 64
NUM_LAYERS = 2
VOCAB = 128
MAX_POS = 64
TYPE_VOCAB = 2
LABEL_NUM = 3
CLF_PAD = 128          # lane-dense classifier output width (sliced to LABEL_NUM in glue)
LN_EPS = 1e-12

BATCH = 2
SEQ = 8


# ------------------------------- Pallas kernels --------------------------------
def _layernorm_f32(x, g, b):
    """LayerNorm over the last axis, f32 math. x:[M,H]  g,b:[1,H]."""
    mean = jnp.mean(x, axis=-1, keepdims=True)
    var = jnp.mean(jnp.square(x - mean), axis=-1, keepdims=True)
    return (x - mean) * jax.lax.rsqrt(var + LN_EPS) * g + b


def _emb_ln_kernel(x_ref, g_ref, b_ref, o_ref):
    """Embedding LayerNorm. x:[M,H] f32 -> o:[M,H] bf16."""
    o_ref[...] = _layernorm_f32(x_ref[...], g_ref[...], b_ref[...]).astype(o_ref.dtype)


def _attn_block_kernel(x_ref, wqkv_ref, bqkv_ref, wo_ref, bo_ref, g_ref, b_ref,
                       o_ref, *, scale):
    """Fused self-attention block for one batch element.

    x:[1,S,H] bf16; wqkv:[H,3H] bf16; bqkv:[1,3H] f32; wo:[H,H] bf16; bo,g,b:[1,H] f32.
    Computes: qkv proj -> per-head softmax(qk^T)v -> output proj -> +residual -> LN.
    """
    x = x_ref[0]                                                   # [S, H] bf16
    qkv = jnp.dot(x, wqkv_ref[...],
                  preferred_element_type=jnp.float32) + bqkv_ref[...]   # [S, 3H] f32

    ctx_heads = []
    for h in range(NUM_HEADS):                                     # static unroll (tiny)
        lo = h * HEAD_DIM
        q = qkv[:, lo:lo + HEAD_DIM].astype(jnp.bfloat16)
        k = qkv[:, HIDDEN + lo:HIDDEN + lo + HEAD_DIM].astype(jnp.bfloat16)
        v = qkv[:, 2 * HIDDEN + lo:2 * HIDDEN + lo + HEAD_DIM].astype(jnp.bfloat16)
        s = jax.lax.dot_general(q, k, (((1,), (1,)), ((), ())),
                                preferred_element_type=jnp.float32) * scale
        m = jnp.max(s, axis=-1, keepdims=True)
        p = jnp.exp(s - m)
        p = p * pl.reciprocal(jnp.sum(p, axis=-1, keepdims=True), approx=True)
        ctx_heads.append(jnp.dot(p.astype(jnp.bfloat16), v,
                                 preferred_element_type=jnp.float32))
    ctx = jnp.concatenate(ctx_heads, axis=-1)                      # [S, H] f32

    attn = jnp.dot(ctx.astype(jnp.bfloat16), wo_ref[...],
                   preferred_element_type=jnp.float32) + bo_ref[...]
    res = attn + x.astype(jnp.float32)
    o_ref[0] = _layernorm_f32(res, g_ref[...], b_ref[...]).astype(o_ref.dtype)


def _ffn_block_kernel(x_ref, wi_ref, bi_ref, wf_ref, bf_ref, g_ref, b_ref, o_ref):
    """Fused FFN block: gelu(x@Wi+bi)@Wf+bf, + residual, + LayerNorm.

    x:[M,H] bf16; wi:[H,I] bf16; bi:[1,I] f32; wf:[I,H] bf16; bf,g,b:[1,H] f32.
    """
    x = x_ref[...]                                                 # [M, H] bf16
    hmid = jnp.dot(x, wi_ref[...],
                   preferred_element_type=jnp.float32) + bi_ref[...]
    # TODO(synk): HF BERT uses exact erf-GELU; tanh approximation used for guaranteed
    #             Mosaic lowering of the elementwise path.
    hmid = jax.nn.gelu(hmid, approximate=True)
    ff = jnp.dot(hmid.astype(jnp.bfloat16), wf_ref[...],
                 preferred_element_type=jnp.float32) + bf_ref[...]
    res = ff + x.astype(jnp.float32)
    o_ref[...] = _layernorm_f32(res, g_ref[...], b_ref[...]).astype(o_ref.dtype)


def _head_kernel(x_ref, wp_ref, bp_ref, wc_ref, bc_ref, o_ref):
    """Fused pooler + classifier. x:[B,H] bf16; wp:[H,H] bf16; wc:[H,CLF_PAD] bf16.

    Output is lane-dense [B, CLF_PAD] f32 (sliced to LABEL_NUM by the caller).
    Dropout between pooler and classifier is identity (eval mode).
    """
    pooled = jnp.tanh(jnp.dot(x_ref[...], wp_ref[...],
                              preferred_element_type=jnp.float32) + bp_ref[...])
    logits = jnp.dot(pooled.astype(jnp.bfloat16), wc_ref[...],
                     preferred_element_type=jnp.float32) + bc_ref[...]
    o_ref[...] = logits


# ------------------------------ kernel wrappers --------------------------------
def pallas_emb_ln(x, g, b):
    m, h = x.shape
    return pl.pallas_call(
        _emb_ln_kernel,
        out_shape=jax.ShapeDtypeStruct((m, h), jnp.bfloat16),
    )(x, g, b)


def pallas_attention_block(h, wqkv, bqkv, wo, bo, g, b):
    bsz, s, hd = h.shape
    x_spec = pl.BlockSpec((1, s, hd), lambda i: (i, 0, 0))

    def full(shape):
        return pl.BlockSpec(shape, lambda i: tuple(0 for _ in shape))

    return pl.pallas_call(
        functools.partial(_attn_block_kernel, scale=1.0 / (HEAD_DIM ** 0.5)),
        out_shape=jax.ShapeDtypeStruct((bsz, s, hd), jnp.bfloat16),
        grid=(bsz,),
        in_specs=[x_spec,
                  full(wqkv.shape), full(bqkv.shape),
                  full(wo.shape), full(bo.shape),
                  full(g.shape), full(b.shape)],
        out_specs=x_spec,
        compiler_params=pltpu.CompilerParams(dimension_semantics=("parallel",)),
    )(h, wqkv, bqkv, wo, bo, g, b)


def pallas_ffn_block(x, wi, bi, wf, bf, g, b):
    m, hd = x.shape
    return pl.pallas_call(
        _ffn_block_kernel,
        out_shape=jax.ShapeDtypeStruct((m, hd), jnp.bfloat16),
    )(x, wi, bi, wf, bf, g, b)


def pallas_head(x, wp, bp, wc, bc):
    bsz = x.shape[0]
    return pl.pallas_call(
        _head_kernel,
        out_shape=jax.ShapeDtypeStruct((bsz, CLF_PAD), jnp.float32),
    )(x, wp, bp, wc, bc)


# ------------------------------ parameter init ---------------------------------
def init_params(key):
    keys = iter(jax.random.split(key, 256))
    nk = lambda: next(keys)
    dense = lambda k_in, k_out: 0.02 * jax.random.normal(nk(), (k_in, k_out), jnp.float32)

    params = {
        "word_emb": 0.02 * jax.random.normal(nk(), (VOCAB, HIDDEN), jnp.float32),
        "pos_emb": 0.02 * jax.random.normal(nk(), (MAX_POS, HIDDEN), jnp.float32),
        "type_emb": 0.02 * jax.random.normal(nk(), (TYPE_VOCAB, HIDDEN), jnp.float32),
        "emb_ln_g": jnp.ones((HIDDEN,), jnp.float32),
        "emb_ln_b": jnp.zeros((HIDDEN,), jnp.float32),
        "layers": [],
        "pool_w": dense(HIDDEN, HIDDEN),
        "pool_b": jnp.zeros((HIDDEN,), jnp.float32),
    }
    for _ in range(NUM_LAYERS):
        params["layers"].append({
            "q_w": dense(HIDDEN, HIDDEN), "q_b": jnp.zeros((HIDDEN,), jnp.float32),
            "k_w": dense(HIDDEN, HIDDEN), "k_b": jnp.zeros((HIDDEN,), jnp.float32),
            "v_w": dense(HIDDEN, HIDDEN), "v_b": jnp.zeros((HIDDEN,), jnp.float32),
            "o_w": dense(HIDDEN, HIDDEN), "o_b": jnp.zeros((HIDDEN,), jnp.float32),
            "ln1_g": jnp.ones((HIDDEN,), jnp.float32),
            "ln1_b": jnp.zeros((HIDDEN,), jnp.float32),
            "i_w": dense(HIDDEN, INTERMEDIATE),
            "i_b": jnp.zeros((INTERMEDIATE,), jnp.float32),
            "fo_w": dense(INTERMEDIATE, HIDDEN),
            "fo_b": jnp.zeros((HIDDEN,), jnp.float32),
            "ln2_g": jnp.ones((HIDDEN,), jnp.float32),
            "ln2_b": jnp.zeros((HIDDEN,), jnp.float32),
        })
    # classifier: nn.Linear(hidden, label_num) with xavier_normal_ weight
    xavier_std = (2.0 / (HIDDEN + LABEL_NUM)) ** 0.5
    params["clf_w"] = xavier_std * jax.random.normal(nk(), (HIDDEN, LABEL_NUM), jnp.float32)
    bound = 1.0 / (HIDDEN ** 0.5)
    params["clf_b"] = jax.random.uniform(nk(), (LABEL_NUM,), jnp.float32, -bound, bound)
    return params


def prepare_params(p):
    """One-time (outside jit) fusion + dtype prep: fused bf16 QKV weights, bf16 matmul
    weights, f32 biases/LN params reshaped to [1, N], classifier padded to 128 lanes."""
    bf16 = lambda w: w.astype(jnp.bfloat16)
    row = lambda v: v.reshape(1, -1)

    prep = {
        "word_emb": p["word_emb"],
        "pos_emb": p["pos_emb"],
        "type_emb": p["type_emb"],
        "emb_ln_g": row(p["emb_ln_g"]),
        "emb_ln_b": row(p["emb_ln_b"]),
        "layers": [],
        "pool_w": bf16(p["pool_w"]),
        "pool_b": row(p["pool_b"]),
        "clf_w": bf16(jnp.pad(p["clf_w"], ((0, 0), (0, CLF_PAD - LABEL_NUM)))),
        "clf_b": row(jnp.pad(p["clf_b"], (0, CLF_PAD - LABEL_NUM))),
    }
    for lp in p["layers"]:
        prep["layers"].append({
            "wqkv": bf16(jnp.concatenate([lp["q_w"], lp["k_w"], lp["v_w"]], axis=1)),
            "bqkv": row(jnp.concatenate([lp["q_b"], lp["k_b"], lp["v_b"]])),
            "wo": bf16(lp["o_w"]), "bo": row(lp["o_b"]),
            "ln1_g": row(lp["ln1_g"]), "ln1_b": row(lp["ln1_b"]),
            "wi": bf16(lp["i_w"]), "bi": row(lp["i_b"]),
            "wf": bf16(lp["fo_w"]), "bf": row(lp["fo_b"]),
            "ln2_g": row(lp["ln2_g"]), "ln2_b": row(lp["ln2_b"]),
        })
    return prep


# --------------------------------- forward -------------------------------------
def bert_classifier_forward(params, input_ids):
    b, s = input_ids.shape

    # --- embeddings (gather is glue; LayerNorm is a Pallas kernel) ---
    emb = (jnp.take(params["word_emb"], input_ids, axis=0)
           + params["pos_emb"][None, :s, :]
           + params["type_emb"][0][None, None, :])
    h = pallas_emb_ln(emb.reshape(b * s, HIDDEN),
                      params["emb_ln_g"], params["emb_ln_b"])       # [b*s, H] bf16
    h = h.reshape(b, s, HIDDEN)

    # --- encoder: 2 fused kernels per layer ---
    for lp in params["layers"]:
        h = pallas_attention_block(h, lp["wqkv"], lp["bqkv"],
                                   lp["wo"], lp["bo"], lp["ln1_g"], lp["ln1_b"])
        h = pallas_ffn_block(h.reshape(b * s, HIDDEN), lp["wi"], lp["bi"],
                             lp["wf"], lp["bf"], lp["ln2_g"], lp["ln2_b"])
        h = h.reshape(b, s, HIDDEN)

    # --- pooler(tanh on [CLS]) + dropout(identity, eval) + classifier (fused) ---
    cls_tok = h[:, 0, :]                                            # [b, H] bf16
    logits_padded = pallas_head(cls_tok, params["pool_w"], params["pool_b"],
                                params["clf_w"], params["clf_b"])   # [b, 128] f32
    return logits_padded[:, :LABEL_NUM]


# ----------------------------------- main ---------------------------------------
if __name__ == "__main__":
    root = jax.random.PRNGKey(0)
    k_params, k_ids = jax.random.split(root)
    params = prepare_params(init_params(k_params))
    input_ids = jax.random.randint(k_ids, (BATCH, SEQ), 0, VOCAB, dtype=jnp.int32)

    fwd = jax.jit(bert_classifier_forward)
    logits = fwd(params, input_ids)
    jax.block_until_ready(logits)

    assert logits.shape == (BATCH, LABEL_NUM) and logits.dtype == jnp.float32
    assert bool(jnp.all(jnp.isfinite(logits)))
    print("KERNEL_OK")
</pallas_src>

<mosaic_0001>
module attributes {stable_mosaic.version = 11 : i64} {
  func.func @_ffn_block_kernel(%arg0: memref<16x32xbf16, #tpu.memory_space<vmem>>, %arg1: memref<32x64xbf16, #tpu.memory_space<vmem>>, %arg2: memref<1x64xf32, #tpu.memory_space<vmem>>, %arg3: memref<64x32xbf16, #tpu.memory_space<vmem>>, %arg4: memref<1x32xf32, #tpu.memory_space<vmem>>, %arg5: memref<1x32xf32, #tpu.memory_space<vmem>>, %arg6: memref<1x32xf32, #tpu.memory_space<vmem>>, %arg7: memref<16x32xbf16, #tpu.memory_space<vmem>>) attributes {dimension_semantics = [], scalar_prefetch = 0 : i64, scratch_operands = 0 : i64, tpu.core_type = #tpu.core_type<tc>} {
    %c0 = arith.constant 0 : index
    %c0_0 = arith.constant 0 : index
    %0 = vector.load %arg0[%c0, %c0_0] : memref<16x32xbf16, #tpu.memory_space<vmem>>, vector<16x32xbf16>
    %c0_1 = arith.constant 0 : index
    %c0_2 = arith.constant 0 : index
    %1 = vector.load %arg1[%c0_1, %c0_2] : memref<32x64xbf16, #tpu.memory_space<vmem>>, vector<32x64xbf16>
    %cst = arith.constant dense<0.000000e+00> : vector<16x64xf32>
    %2 = tpu.matmul %0, %1, %cst {dimension_numbers = #tpu.dot_dimension_numbers<[1], [0], [0], [1], [0, 0, 1, 1], [], []>} : vector<16x32xbf16>, vector<32x64xbf16>, vector<16x64xf32> -> vector<16x64xf32>
    %c0_3 = arith.constant 0 : index
    %c0_4 = arith.constant 0 : index
    %3 = vector.load %arg2[%c0_3, %c0_4] : memref<1x64xf32, #tpu.memory_space<vmem>>, vector<1x64xf32>
    %4 = vector.broadcast %3 : vector<1x64xf32> to vector<16x64xf32>
    %5 = arith.addf %2, %4 : vector<16x64xf32>
    %6 = arith.mulf %5, %5 : vector<16x64xf32>
    %7 = arith.mulf %5, %6 : vector<16x64xf32>
    %cst_5 = arith.constant 4.471500e-02 : f32
    %8 = vector.broadcast %cst_5 : f32 to vector<16x64xf32>
    %9 = arith.mulf %8, %7 : vector<16x64xf32>
    %10 = arith.addf %5, %9 : vector<16x64xf32>
    %cst_6 = arith.constant 0.797884583 : f32
    %11 = vector.broadcast %cst_6 : f32 to vector<16x64xf32>
    %12 = arith.mulf %11, %10 : vector<16x64xf32>
    %13 = math.tanh %12 : vector<16x64xf32>
    %cst_7 = arith.constant 1.000000e+00 : f32
    %14 = vector.broadcast %cst_7 : f32 to vector<16x64xf32>
    %15 = arith.addf %14, %13 : vector<16x64xf32>
    %cst_8 = arith.constant 5.000000e-01 : f32
    %16 = vector.broadcast %cst_8 : f32 to vector<16x64xf32>
    %17 = arith.mulf %16, %15 : vector<16x64xf32>
    %18 = arith.mulf %5, %17 : vector<16x64xf32>
    %19 = arith.truncf %18 : vector<16x64xf32> to vector<16x64xbf16>
    %c0_9 = arith.constant 0 : index
    %c0_10 = arith.constant 0 : index
    %20 = vector.load %arg3[%c0_9, %c0_10] : memref<64x32xbf16, #tpu.memory_space<vmem>>, vector<64x32xbf16>
    %cst_11 = arith.constant dense<0.000000e+00> : vector<16x32xf32>
    %21 = tpu.matmul %19, %20, %cst_11 {dimension_numbers = #tpu.dot_dimension_numbers<[1], [0], [0], [1], [0, 0, 1, 1], [], []>} : vector<16x64xbf16>, vector<64x32xbf16>, vector<16x32xf32> -> vector<16x32xf32>
    %c0_12 = arith.constant 0 : index
    %c0_13 = arith.constant 0 : index
    %22 = vector.load %arg4[%c0_12, %c0_13] : memref<1x32xf32, #tpu.memory_space<vmem>>, vector<1x32xf32>
    %23 = vector.broadcast %22 : vector<1x32xf32> to vector<16x32xf32>
    %24 = arith.addf %21, %23 : vector<16x32xf32>
    %25 = arith.extf %0 : vector<16x32xbf16> to vector<16x32xf32>
    %26 = arith.addf %24, %25 : vector<16x32xf32>
    %c0_14 = arith.constant 0 : index
    %c0_15 = arith.constant 0 : index
    %27 = vector.load %arg5[%c0_14, %c0_15] : memref<1x32xf32, #tpu.memory_space<vmem>>, vector<1x32xf32>
    %c0_16 = arith.constant 0 : index
    %c0_17 = arith.constant 0 : index
    %28 = vector.load %arg6[%c0_16, %c0_17] : memref<1x32xf32, #tpu.memory_space<vmem>>, vector<1x32xf32>
    %cst_18 = arith.constant dense<0.000000e+00> : vector<16xf32>
    %29 = vector.multi_reduction <add>, %26, %cst_18 [1] : vector<16x32xf32> to vector<16xf32>
    %30 = vector.shape_cast %29 : vector<16xf32> to vector<16x1xf32>
    %cst_19 = arith.constant 3.200000e+01 : f32
    %31 = vector.broadcast %cst_19 : f32 to vector<16x1xf32>
    %32 = arith.divf %30, %31 : vector<16x1xf32>
    %33 = vector.broadcast %32 : vector<16x1xf32> to vector<16x32xf32>
    %34 = arith.subf %26, %33 : vector<16x32xf32>
    %35 = arith.mulf %34, %34 : vector<16x32xf32>
    %cst_20 = arith.constant dense<0.000000e+00> : vector<16xf32>
    %36 = vector.multi_reduction <add>, %35, %cst_20 [1] : vector<16x32xf32> to vector<16xf32>
    %37 = vector.shape_cast %36 : vector<16xf32> to vector<16x1xf32>
    %cst_21 = arith.constant 3.200000e+01 : f32
    %38 = vector.broadcast %cst_21 : f32 to vector<16x1xf32>
    %39 = arith.divf %37, %38 : vector<16x1xf32>
    %40 = vector.broadcast %32 : vector<16x1xf32> to vector<16x32xf32>
    %41 = arith.subf %26, %40 : vector<16x32xf32>
    %cst_22 = arith.constant 9.99999996E-13 : f32
    %42 = vector.broadcast %cst_22 : f32 to vector<16x1xf32>
    %43 = arith.addf %39, %42 : vector<16x1xf32>
    %44 = math.rsqrt %43 : vector<16x1xf32>
    %45 = vector.broadcast %44 : vector<16x1xf32> to vector<16x32xf32>
    %46 = arith.mulf %41, %45 : vector<16x32xf32>
    %47 = vector.broadcast %27 : vector<1x32xf32> to vector<16x32xf32>
    %48 = arith.mulf %46, %47 : vector<16x32xf32>
    %49 = vector.broadcast %28 : vector<1x32xf32> to vector<16x32xf32>
    %50 = arith.addf %48, %49 : vector<16x32xf32>
    %51 = arith.truncf %50 : vector<16x32xf32> to vector<16x32xbf16>
    %c0_23 = arith.constant 0 : index
    %c0_24 = arith.constant 0 : index
    %52 = vector.load %arg7[%c0_23, %c0_24] : memref<16x32xbf16, #tpu.memory_space<vmem>>, vector<16x32xbf16>
    tpu.vector_store %arg7[%c0_23, %c0_24], %51 {strides = array<i32>} : memref<16x32xbf16, #tpu.memory_space<vmem>>, vector<16x32xbf16>,
    return
  }
}

module attributes {stable_mosaic.version = 11 : i64} {
  func.func @_emb_ln_kernel(%arg0: memref<16x32xf32, #tpu.memory_space<vmem>>, %arg1: memref<1x32xf32, #tpu.memory_space<vmem>>, %arg2: memref<1x32xf32, #tpu.memory_space<vmem>>, %arg3: memref<16x32xbf16, #tpu.memory_space<vmem>>) attributes {dimension_semantics = [], scalar_prefetch = 0 : i64, scratch_operands = 0 : i64, tpu.core_type = #tpu.core_type<tc>} {
    %c0 = arith.constant 0 : index
    %c0_0 = arith.constant 0 : index
    %0 = vector.load %arg0[%c0, %c0_0] : memref<16x32xf32, #tpu.memory_space<vmem>>, vector<16x32xf32>
    %c0_1 = arith.constant 0 : index
    %c0_2 = arith.constant 0 : index
    %1 = vector.load %arg1[%c0_1, %c0_2] : memref<1x32xf32, #tpu.memory_space<vmem>>, vector<1x32xf32>
    %c0_3 = arith.constant 0 : index
    %c0_4 = arith.constant 0 : index
    %2 = vector.load %arg2[%c0_3, %c0_4] : memref<1x32xf32, #tpu.memory_space<vmem>>, vector<1x32xf32>
    %cst = arith.constant dense<0.000000e+00> : vector<16xf32>
    %3 = vector.multi_reduction <add>, %0, %cst [1] : vector<16x32xf32> to vector<16xf32>
    %4 = vector.shape_cast %3 : vector<16xf32> to vector<16x1xf32>
    %cst_5 = arith.constant 3.200000e+01 : f32
    %5 = vector.broadcast %cst_5 : f32 to vector<16x1xf32>
    %6 = arith.divf %4, %5 : vector<16x1xf32>
    %7 = vector.broadcast %6 : vector<16x1xf32> to vector<16x32xf32>
    %8 = arith.subf %0, %7 : vector<16x32xf32>
    %9 = arith.mulf %8, %8 : vector<16x32xf32>
    %cst_6 = arith.constant dense<0.000000e+00> : vector<16xf32>
    %10 = vector.multi_reduction <add>, %9, %cst_6 [1] : vector<16x32xf32> to vector<16xf32>
    %11 = vector.shape_cast %10 : vector<16xf32> to vector<16x1xf32>
    %cst_7 = arith.constant 3.200000e+01 : f32
    %12 = vector.broadcast %cst_7 : f32 to vector<16x1xf32>
    %13 = arith.divf %11, %12 : vector<16x1xf32>
    %14 = vector.broadcast %6 : vector<16x1xf32> to vector<16x32xf32>
    %15 = arith.subf %0, %14 : vector<16x32xf32>
    %cst_8 = arith.constant 9.99999996E-13 : f32
    %16 = vector.broadcast %cst_8 : f32 to vector<16x1xf32>
    %17 = arith.addf %13, %16 : vector<16x1xf32>
    %18 = math.rsqrt %17 : vector<16x1xf32>
    %19 = vector.broadcast %18 : vector<16x1xf32> to vector<16x32xf32>
    %20 = arith.mulf %15, %19 : vector<16x32xf32>
    %21 = vector.broadcast %1 : vector<1x32xf32> to vector<16x32xf32>
    %22 = arith.mulf %20, %21 : vector<16x32xf32>
    %23 = vector.broadcast %2 : vector<1x32xf32> to vector<16x32xf32>
    %24 = arith.addf %22, %23 : vector<16x32xf32>
    %25 = arith.truncf %24 : vector<16x32xf32> to vector<16x32xbf16>
    %c0_9 = arith.constant 0 : index
    %c0_10 = arith.constant 0 : index
    %26 = vector.load %arg3[%c0_9, %c0_10] : memref<16x32xbf16, #tpu.memory_space<vmem>>, vector<16x32xbf16>
    tpu.vector_store %arg3[%c0_9, %c0_10], %25 {strides = array<i32>} : memref<16x32xbf16, #tpu.memory_space<vmem>>, vector<16x32xbf16>,
    return
  }
}

module attributes {stable_mosaic.version = 11 : i64} {
  func.func @_attn_block_kernel(%arg0: i32, %arg1: memref<1x8x32xbf16, #tpu.memory_space<vmem>>, %arg2: memref<32x96xbf16, #tpu.memory_space<vmem>>, %arg3: memref<1x96xf32, #tpu.memory_space<vmem>>, %arg4: memref<32x32xbf16, #tpu.memory_space<vmem>>, %arg5: memref<1x32xf32, #tpu.memory_space<vmem>>, %arg6: memref<1x32xf32, #tpu.memory_space<vmem>>, %arg7: memref<1x32xf32, #tpu.memory_space<vmem>>, %arg8: memref<1x8x32xbf16, #tpu.memory_space<vmem>>) attributes {dimension_semantics = [#tpu.dimension_semantics<parallel>], iteration_bounds = array<i64: 2>, scalar_prefetch = 0 : i64, scratch_operands = 0 : i64, tpu.core_type = #tpu.core_type<tc>, window_params = [{transform_indices = @transform_0, window_bounds = array<i64: 1, 8, 32>}, {pipeline_mode = #tpu.pipeline_mode<synchronous>, transform_indices = @transform_1, window_bounds = array<i64: 32, 96>}, {pipeline_mode = #tpu.pipeline_mode<synchronous>, transform_indices = @transform_2, window_bounds = array<i64: 1, 96>}, {pipeline_mode = #tpu.pipeline_mode<synchronous>, transform_indices = @transform_3, window_bounds = array<i64: 32, 32>}, {pipeline_mode = #tpu.pipeline_mode<synchronous>, transform_indices = @transform_4, window_bounds = array<i64: 1, 32>}, {pipeline_mode = #tpu.pipeline_mode<synchronous>, transform_indices = @transform_5, window_bounds = array<i64: 1, 32>}, {pipeline_mode = #tpu.pipeline_mode<synchronous>, transform_indices = @transform_6, window_bounds = array<i64: 1, 32>}, {transform_indices = @transform_7, window_bounds = array<i64: 1, 8, 32>}]} {
    %c0 = arith.constant 0 : index
    %c0_0 = arith.constant 0 : index
    %c0_1 = arith.constant 0 : index
    %0 = vector.load %arg1[%c0, %c0_0, %c0_1] : memref<1x8x32xbf16, #tpu.memory_space<vmem>>, vector<1x8x32xbf16>
    %1 = vector.shape_cast %0 : vector<1x8x32xbf16> to vector<8x32xbf16>
    %c0_2 = arith.constant 0 : index
    %c0_3 = arith.constant 0 : index
    %2 = vector.load %arg2[%c0_2, %c0_3] : memref<32x96xbf16, #tpu.memory_space<vmem>>, vector<32x96xbf16>
    %cst = arith.constant dense<0.000000e+00> : vector<8x96xf32>
    %3 = tpu.matmul %1, %2, %cst {dimension_numbers = #tpu.dot_dimension_numbers<[1], [0], [0], [1], [0, 0, 1, 1], [], []>} : vector<8x32xbf16>, vector<32x96xbf16>, vector<8x96xf32> -> vector<8x96xf32>
    %c0_4 = arith.constant 0 : index
    %c0_5 = arith.constant 0 : index
    %4 = vector.load %arg3[%c0_4, %c0_5] : memref<1x96xf32, #tpu.memory_space<vmem>>, vector<1x96xf32>
    %5 = vector.broadcast %4 : vector<1x96xf32> to vector<8x96xf32>
    %6 = arith.addf %3, %5 : vector<8x96xf32>
    %7 = vector.extract_strided_slice %6 {offsets = [0, 0], sizes = [8, 16], strides = [1, 1]} : vector<8x96xf32> to vector<8x16xf32>
    %8 = arith.truncf %7 : vector<8x16xf32> to vector<8x16xbf16>
    %9 = vector.extract_strided_slice %6 {offsets = [0, 32], sizes = [8, 16], strides = [1, 1]} : vector<8x96xf32> to vector<8x16xf32>
    %10 = arith.truncf %9 : vector<8x16xf32> to vector<8x16xbf16>
    %11 = vector.extract_strided_slice %6 {offsets = [0, 64], sizes = [8, 16], strides = [1, 1]} : vector<8x96xf32> to vector<8x16xf32>
    %12 = arith.truncf %11 : vector<8x16xf32> to vector<8x16xbf16>
    %cst_6 = arith.constant dense<0.000000e+00> : vector<8x8xf32>
    %13 = tpu.matmul %8, %10, %cst_6 {dimension_numbers = #tpu.dot_dimension_numbers<[1], [1], [0], [0], [0, 0, 1, 0], [], []>} : vector<8x16xbf16>, vector<8x16xbf16>, vector<8x8xf32> -> vector<8x8xf32>
    %cst_7 = arith.constant 2.500000e-01 : f32
    %14 = vector.broadcast %cst_7 : f32 to vector<8x8xf32>
    %15 = arith.mulf %13, %14 : vector<8x8xf32>
    %cst_8 = arith.constant dense<0xFF800000> : vector<8xf32>
    %16 = vector.multi_reduction <maximumf>, %15, %cst_8 [1] : vector<8x8xf32> to vector<8xf32>
    %17 = vector.shape_cast %16 : vector<8xf32> to vector<8x1xf32>
    %18 = vector.broadcast %17 : vector<8x1xf32> to vector<8x8xf32>
    %19 = arith.subf %15, %18 : vector<8x8xf32>
    %20 = math.exp %19 : vector<8x8xf32>
    %cst_9 = arith.constant dense<0.000000e+00> : vector<8xf32>
    %21 = vector.multi_reduction <add>, %20, %cst_9 [1] : vector<8x8xf32> to vector<8xf32>
    %22 = vector.shape_cast %21 : vector<8xf32> to vector<8x1xf32>
    %23 = tpu.reciprocal %22 {approx = true} : vector<8x1xf32> -> vector<8x1xf32>
    %24 = vector.broadcast %23 : vector<8x1xf32> to vector<8x8xf32>
    %25 = arith.mulf %20, %24 : vector<8x8xf32>
    %26 = arith.truncf %25 : vector<8x8xf32> to vector<8x8xbf16>
    %cst_10 = arith.constant dense<0.000000e+00> : vector<8x16xf32>
    %27 = tpu.matmul %26, %12, %cst_10 {dimension_numbers = #tpu.dot_dimension_numbers<[1], [0], [0], [1], [0, 0, 1, 1], [], []>} : vector<8x8xbf16>, vector<8x16xbf16>, vector<8x16xf32> -> vector<8x16xf32>
    %28 = vector.extract_strided_slice %6 {offsets = [0, 16], sizes = [8, 16], strides = [1, 1]} : vector<8x96xf32> to vector<8x16xf32>
    %29 = arith.truncf %28 : vector<8x16xf32> to vector<8x16xbf16>
    %30 = vector.extract_strided_slice %6 {offsets = [0, 48], sizes = [8, 16], strides = [1, 1]} : vector<8x96xf32> to vector<8x16xf32>
    %31 = arith.truncf %30 : vector<8x16xf32> to vector<8x16xbf16>
    %32 = vector.extract_strided_slice %6 {offsets = [0, 80], sizes = [8, 16], strides = [1, 1]} : vector<8x96xf32> to vector<8x16xf32>
    %33 = arith.truncf %32 : vector<8x16xf32> to vector<8x16xbf16>
    %cst_11 = arith.constant dense<0.000000e+00> : vector<8x8xf32>
    %34 = tpu.matmul %29, %31, %cst_11 {dimension_numbers = #tpu.dot_dimension_numbers<[1], [1], [0], [0], [0, 0, 1, 0], [], []>} : vector<8x16xbf16>, vector<8x16xbf16>, vector<8x8xf32> -> vector<8x8xf32>
    %cst_12 = arith.constant 2.500000e-01 : f32
    %35 = vector.broadcast %cst_12 : f32 to vector<8x8xf32>
    %36 = arith.mulf %34, %35 : vector<8x8xf32>
    %cst_13 = arith.constant dense<0xFF800000> : vector<8xf32>
    %37 = vector.multi_reduction <maximumf>, %36, %cst_13 [1] : vector<8x8xf32> to vector<8xf32>
    %38 = vector.shape_cast %37 : vector<8xf32> to vector<8x1xf32>
    %39 = vector.broadcast %38 : vector<8x1xf32> to vector<8x8xf32>
    %40 = arith.subf %36, %39 : vector<8x8xf32>
    %41 = math.exp %40 : vector<8x8xf32>
    %cst_14 = arith.constant dense<0.000000e+00> : vector<8xf32>
    %42 = vector.multi_reduction <add>, %41, %cst_14 [1] : vector<8x8xf32> to vector<8xf32>
    %43 = vector.shape_cast %42 : vector<8xf32> to vector<8x1xf32>
    %44 = tpu.reciprocal %43 {approx = true} : vector<8x1xf32> -> vector<8x1xf32>
    %45 = vector.broadcast %44 : vector<8x1xf32> to vector<8x8xf32>
    %46 = arith.mulf %41, %45 : vector<8x8xf32>
    %47 = arith.truncf %46 : vector<8x8xf32> to vector<8x8xbf16>
    %cst_15 = arith.constant dense<0.000000e+00> : vector<8x16xf32>
    %48 = tpu.matmul %47, %33, %cst_15 {dimension_numbers = #tpu.dot_dimension_numbers<[1], [0], [0], [1], [0, 0, 1, 1], [], []>} : vector<8x8xbf16>, vector<8x16xbf16>, vector<8x16xf32> -> vector<8x16xf32>
    %49 = tpu.concatenate %27, %48 in 1 : vector<8x16xf32>, vector<8x16xf32> -> vector<8x32xf32>
    %50 = arith.truncf %49 : vector<8x32xf32> to vector<8x32xbf16>
    %c0_16 = arith.constant 0 : index
    %c0_17 = arith.constant 0 : index
    %51 = vector.load %arg4[%c0_16, %c0_17] : memref<32x32xbf16, #tpu.memory_space<vmem>>, vector<32x32xbf16>
    %cst_18 = arith.constant dense<0.000000e+00> : vector<8x32xf32>
    %52 = tpu.matmul %50, %51, %cst_18 {dimension_numbers = #tpu.dot_dimension_numbers<[1], [0], [0], [1], [0, 0, 1, 1], [], []>} : vector<8x32xbf16>, vector<32x32xbf16>, vector<8x32xf32> -> vector<8x32xf32>
    %c0_19 = arith.constant 0 : index
    %c0_20 = arith.constant 0 : index
    %53 = vector.load %arg5[%c0_19, %c0_20] : memref<1x32xf32, #tpu.memory_space<vmem>>, vector<1x32xf32>
    %54 = vector.broadcast %53 : vector<1x32xf32> to vector<8x32xf32>
    %55 = arith.addf %52, %54 : vector<8x32xf32>
    %56 = arith.extf %1 : vector<8x32xbf16> to vector<8x32xf32>
    %57 = arith.addf %55, %56 : vector<8x32xf32>
    %c0_21 = arith.constant 0 : index
    %c0_22 = arith.constant 0 : index
    %58 = vector.load %arg6[%c0_21, %c0_22] : memref<1x32xf32, #tpu.memory_space<vmem>>, vector<1x32xf32>
    %c0_23 = arith.constant 0 : index
    %c0_24 = arith.constant 0 : index
    %59 = vector.load %arg7[%c0_23, %c0_24] : memref<1x32xf32, #tpu.memory_space<vmem>>, vector<1x32xf32>
    %cst_25 = arith.constant dense<0.000000e+00> : vector<8xf32>
    %60 = vector.multi_reduction <add>, %57, %cst_25 [1] : vector<8x32xf32> to vector<8xf32>
    %61 = vector.shape_cast %60 : vector<8xf32> to vector<8x1xf32>
    %cst_26 = arith.constant 3.200000e+01 : f32
    %62 = vector.broadcast %cst_26 : f32 to vector<8x1xf32>
    %63 = arith.divf %61, %62 : vector<8x1xf32>
    %64 = vector.broadcast %63 : vector<8x1xf32> to vector<8x32xf32>
    %65 = arith.subf %57, %64 : vector<8x32xf32>
    %66 = arith.mulf %65, %65 : vector<8x32xf32>
    %cst_27 = arith.constant dense<0.000000e+00> : vector<8xf32>
    %67 = vector.multi_reduction <add>, %66, %cst_27 [1] : vector<8x32xf32> to vector<8xf32>
    %68 = vector.shape_cast %67 : vector<8xf32> to vector<8x1xf32>
    %cst_28 = arith.constant 3.200000e+01 : f32
    %69 = vector.broadcast %cst_28 : f32 to vector<8x1xf32>
    %70 = arith.divf %68, %69 : vector<8x1xf32>
    %71 = vector.broadcast %63 : vector<8x1xf32> to vector<8x32xf32>
    %72 = arith.subf %57, %71 : vector<8x32xf32>
    %cst_29 = arith.constant 9.99999996E-13 : f32
    %73 = vector.broadcast %cst_29 : f32 to vector<8x1xf32>
    %74 = arith.addf %70, %73 : vector<8x1xf32>
    %75 = math.rsqrt %74 : vector<8x1xf32>
    %76 = vector.broadcast %75 : vector<8x1xf32> to vector<8x32xf32>
    %77 = arith.mulf %72, %76 : vector<8x32xf32>
    %78 = vector.broadcast %58 : vector<1x32xf32> to vector<8x32xf32>
    %79 = arith.mulf %77, %78 : vector<8x32xf32>
    %80 = vector.broadcast %59 : vector<1x32xf32> to vector<8x32xf32>
    %81 = arith.addf %79, %80 : vector<8x32xf32>
    %82 = arith.truncf %81 : vector<8x32xf32> to vector<8x32xbf16>
    %c0_30 = arith.constant 0 : index
    %c0_31 = arith.constant 0 : index
    %c0_32 = arith.constant 0 : index
    %83 = vector.load %arg8[%c0_30, %c0_31, %c0_32] : memref<1x8x32xbf16, #tpu.memory_space<vmem>>, vector<1x8x32xbf16>
    %84 = vector.shape_cast %83 : vector<1x8x32xbf16> to vector<8x32xbf16>
    %85 = vector.shape_cast %82 : vector<8x32xbf16> to vector<1x8x32xbf16>
    tpu.vector_store %arg8[%c0_30, %c0_31, %c0_32], %85 {strides = array<i32>} : memref<1x8x32xbf16, #tpu.memory_space<vmem>>, vector<1x8x32xbf16>,
    return
  }
  func.func @transform_0(%arg0: i32) -> (i32, i32, i32) {
    %c0_i32 = arith.constant 0 : i32
    %c0_i32_0 = arith.constant 0 : i32
    %c0_i32_1 = arith.constant 0 : i32
    return %arg0, %c0_i32, %c0_i32_0 : i32, i32, i32
  }
  func.func @transform_1(%arg0: i32) -> (i32, i32) {
    %c0_i32 = arith.constant 0 : i32
    %c0_i32_0 = arith.constant 0 : i32
    %c0_i32_1 = arith.constant 0 : i32
    return %c0_i32, %c0_i32_0 : i32, i32
  }
  func.func @transform_2(%arg0: i32) -> (i32, i32) {
    %c0_i32 = arith.constant 0 : i32
    %c0_i32_0 = arith.constant 0 : i32
    %c0_i32_1 = arith.constant 0 : i32
    return %c0_i32, %c0_i32_0 : i32, i32
  }
  func.func @transform_3(%arg0: i32) -> (i32, i32) {
    %c0_i32 = arith.constant 0 : i32
    %c0_i32_0 = arith.constant 0 : i32
    %c0_i32_1 = arith.constant 0 : i32
    return %c0_i32, %c0_i32_0 : i32, i32
  }
  func.func @transform_4(%arg0: i32) -> (i32, i32) {
    %c0_i32 = arith.constant 0 : i32
    %c0_i32_0 = arith.constant 0 : i32
    %c0_i32_1 = arith.constant 0 : i32
    return %c0_i32, %c0_i32_0 : i32, i32
  }
  func.func @transform_5(%arg0: i32) -> (i32, i32) {
    %c0_i32 = arith.constant 0 : i32
    %c0_i32_0 = arith.constant 0 : i32
    %c0_i32_1 = arith.constant 0 : i32
    return %c0_i32, %c0_i32_0 : i32, i32
  }
  func.func @transform_6(%arg0: i32) -> (i32, i32) {
    %c0_i32 = arith.constant 0 : i32
    %c0_i32_0 = arith.constant 0 : i32
    %c0_i32_1 = arith.constant 0 : i32
    return %c0_i32, %c0_i32_0 : i32, i32
  }
  func.func @transform_7(%arg0: i32) -> (i32, i32, i32) {
    %c0_i32 = arith.constant 0 : i32
    %c0_i32_0 = arith.constant 0 : i32
    %c0_i32_1 = arith.constant 0 : i32
    return %arg0, %c0_i32, %c0_i32_0 : i32, i32, i32
  }
}

module attributes {stable_mosaic.version = 11 : i64} {
  func.func @_head_kernel(%arg0: memref<2x32xbf16, #tpu.memory_space<vmem>>, %arg1: memref<32x32xbf16, #tpu.memory_space<vmem>>, %arg2: memref<1x32xf32, #tpu.memory_space<vmem>>, %arg3: memref<32x128xbf16, #tpu.memory_space<vmem>>, %arg4: memref<1x128xf32, #tpu.memory_space<vmem>>, %arg5: memref<2x128xf32, #tpu.memory_space<vmem>>) attributes {dimension_semantics = [], scalar_prefetch = 0 : i64, scratch_operands = 0 : i64, tpu.core_type = #tpu.core_type<tc>} {
    %c0 = arith.constant 0 : index
    %c0_0 = arith.constant 0 : index
    %0 = vector.load %arg0[%c0, %c0_0] : memref<2x32xbf16, #tpu.memory_space<vmem>>, vector<2x32xbf16>
    %c0_1 = arith.constant 0 : index
    %c0_2 = arith.constant 0 : index
    %1 = vector.load %arg1[%c0_1, %c0_2] : memref<32x32xbf16, #tpu.memory_space<vmem>>, vector<32x32xbf16>
    %cst = arith.constant dense<0.000000e+00> : vector<2x32xf32>
    %2 = tpu.matmul %0, %1, %cst {dimension_numbers = #tpu.dot_dimension_numbers<[1], [0], [0], [1], [0, 0, 1, 1], [], []>} : vector<2x32xbf16>, vector<32x32xbf16>, vector<2x32xf32> -> vector<2x32xf32>
    %c0_3 = arith.constant 0 : index
    %c0_4 = arith.constant 0 : index
    %3 = vector.load %arg2[%c0_3, %c0_4] : memref<1x32xf32, #tpu.memory_space<vmem>>, vector<1x32xf32>
    %4 = vector.broadcast %3 : vector<1x32xf32> to vector<2x32xf32>
    %5 = arith.addf %2, %4 : vector<2x32xf32>
    %6 = math.tanh %5 : vector<2x32xf32>
    %7 = arith.truncf %6 : vector<2x32xf32> to vector<2x32xbf16>
    %c0_5 = arith.constant 0 : index
    %c0_6 = arith.constant 0 : index
    %8 = vector.load %arg3[%c0_5, %c0_6] : memref<32x128xbf16, #tpu.memory_space<vmem>>, vector<32x128xbf16>
    %cst_7 = arith.constant dense<0.000000e+00> : vector<2x128xf32>
    %9 = tpu.matmul %7, %8, %cst_7 {dimension_numbers = #tpu.dot_dimension_numbers<[1], [0], [0], [1], [0, 0, 1, 1], [], []>} : vector<2x32xbf16>, vector<32x128xbf16>, vector<2x128xf32> -> vector<2x128xf32>
    %c0_8 = arith.constant 0 : index
    %c0_9 = arith.constant 0 : index
    %10 = vector.load %arg4[%c0_8, %c0_9] : memref<1x128xf32, #tpu.memory_space<vmem>>, vector<1x128xf32>
    %11 = vector.broadcast %10 : vector<1x128xf32> to vector<2x128xf32>
    %12 = arith.addf %9, %11 : vector<2x128xf32>
    %c0_10 = arith.constant 0 : index
    %c0_11 = arith.constant 0 : index
    %13 = vector.load %arg5[%c0_10, %c0_11] : memref<2x128xf32, #tpu.memory_space<vmem>>, vector<2x128xf32>
    tpu.vector_store %arg5[%c0_10, %c0_11], %12 {strides = array<i32>} : memref<2x128xf32, #tpu.memory_space<vmem>>, vector<2x128xf32>,
    return
  }
}

</mosaic_0001>

<llo_original>
// kernel: bert_classifier_forward.11
$region0: #{bert_classifier_forward.11}
  #allocation0 [shape = 'u32[]', space=smem, size = 0x4, offset = 0x4, fixed_abs, tag = 'smem constant byte address 0x4 - core index']
  #allocation1 [shape = 'u32[144,128]{1,0:T(1,128)}', space=vmem, size = 0x12000, scoped, tag = 'internal scratch']
  %s0 = inlined_call_operand.vmem [shape: bf16[2,32], index: 0, kind: input, shape index: {}]
  %s1 = inlined_call_operand.vmem [shape: bf16[32,32], index: 1, kind: input, shape index: {}]
  %s2 = inlined_call_operand.vmem [shape: f32[1,32], index: 2, kind: input, shape index: {}]
  %s3 = inlined_call_operand.vmem [shape: bf16[32,128], index: 3, kind: input, shape index: {}]
  %s4 = inlined_call_operand.vmem [shape: f32[1,128], index: 4, kind: input, shape index: {}]
  %s5 = inlined_call_operand.hbm [shape: f32[2,128], index: 5, kind: output, shape index: {}]
  %s6 = sld [smem:[#allocation0]]
  $region30: #{bert_classifier_forward.11} parent=0
    _
  %s8 = ssub.s32 1, %s6
  %s9 = scalar_select 0, %s8, %s6
  $region1: #{bert_classifier_forward.11} parent=0
    #allocation2 [shape = 'u8[1024]{0}', space=vmem, size = 0x400, scoped, tag = 'output window, operand 0, single buffered']
    #allocation3 [shape = 's32[1]{0}', space=sflag, size = 0x4, scoped, tag = 'scoped memory for bert_classifier_forward.11']
    %10 = vsyncpa [#allocation3], 0
    // Predicated region
    $region2: #{bert_classifier_forward.11} parent=1 // pred_check
      _
    $region3: #{bert_classifier_forward.11} parent=1 // pred_check_branch
      %12 = sbr.rel (0) target = $region5
    $region4: #{bert_classifier_forward.11} parent=1 // pred_region
      _
    $region5: #{bert_classifier_forward.11} parent=1 // pred_fallthru
      _
    // Predicated region
    $region6: #{bert_classifier_forward.11} parent=1 // pred_check
      _
    $region7: #{bert_classifier_forward.11} parent=1 // pred_check_branch
      %14 = sbr.rel (0) target = $region9
    $region8: #{bert_classifier_forward.11} parent=1 // pred_region
      _
    $region9: #{bert_classifier_forward.11} parent=1 // pred_fallthru
      _
    // Predicated region
    $region10: #{bert_classifier_forward.11} parent=1 // pred_check
      _
    $region11: #{bert_classifier_forward.11} parent=1 // pred_check_branch
      %16 = sbr.rel (0) target = $region13
    $region12: #{bert_classifier_forward.11} parent=1 // pred_region
      _
    $region13: #{bert_classifier_forward.11} parent=1 // pred_fallthru
      _
    // Predicated region
    $region14: #{bert_classifier_forward.11} parent=1 // pred_check
      _
    $region15: #{bert_classifier_forward.11} parent=1 // pred_check_branch
      %18 = sbr.rel (0) target = $region17
    $region16: #{bert_classifier_forward.11} parent=1 // pred_region
      _
    $region17: #{bert_classifier_forward.11} parent=1 // pred_fallthru
      _
    // Predicated region
    $region18: #{bert_classifier_forward.11} parent=1 // pred_check
      _
    $region19: #{bert_classifier_forward.11} parent=1 // pred_check_branch
      %20 = sbr.rel (0) target = $region21
    $region20: #{bert_classifier_forward.11} parent=1 // pred_region
      _
    $region21: #{bert_classifier_forward.11} parent=1 // pred_fallthru
      _
    %v22 = vld [vmem:[%s0] sm:$0x1]
    %v23 = vld [vmem:[%s1] sm:$0xf]
    %v24 = vld [vmem:[%s1 + $0x4] sm:$0xf]
    %v25 = vld [vmem:[%s1 + $0x8] sm:$0xf]
    %v26 = vld [vmem:[%s1 + $0xc] sm:$0xf]
    %v27 = vld [vmem:[%s2] sm:$0x1]
    %v29 = vlaneseq
    %v30 = vshrl.u32 %v29, 7
    %v31 = vsub.s32 0, %v30
    %v32 = vrot.slane %v27, %v31
    %v38 = vunpack.c.l.b16 %v23
    %v39 = vunpack.c.l.b16 %v24
    %v40 = vunpack.c.l.b16 %v25
    %v41 = vunpack.c.l.b16 %v26
    %v42 = vpack.c.b16 %v39, %v38
    %v43 = vpack.c.b16 %v41, %v40
    %vm46 = vcmask 261120
    %v48 = vsel %vm46, %v22, 0
    %50 = vmatprep.subr.bf16.mxu0 0
    %51 = vmatpush1.bf16.msra.mxu0 0
    %52 = vmatprep.subr.bf16.mxu0 0
    %53 = vmatpush1.bf16.msra.mxu0 0
    %54 = vmatprep.subr.bf16.mxu0 0
    %55 = vmatpush1.bf16.msra.mxu0 0
    %56 = vmatprep.subr.bf16.mxu0 0
    %57 = vmatpush1.bf16.msra.mxu0 0
    %58 = vmatprep.subr.bf16.mxu0 0
    %59 = vmatpush1.bf16.msra.mxu0 0
    %60 = vmatprep.subr.bf16.mxu0 0
    %61 = vmatpush1.bf16.msra.mxu0 0
    %62 = vmatprep.subr.bf16.mxu0 0
    %63 = vmatpush1.bf16.msra.mxu0 %v43
    %64 = vmatprep.subr.bf16.mxu0 0
    %65 = vmatpush1.bf16.msra.mxu0 %v42
    %66 = vmatprep.subr.bf16.mxu0 0
    %67 = vmatpush2.bf16.msra.mxu0 0
    %68 = vmatprep.subr.bf16.mxu0 0
    %69 = vmatpush2.bf16.msra.mxu0 0
    %70 = vmatprep.subr.bf16.mxu0 0
    %71 = vmatpush2.bf16.msra.mxu0 0
    %72 = vmatprep.subr.bf16.mxu0 0
    %73 = vmatpush2.bf16.msra.mxu0 0
    %74 = vmatprep.subr.bf16.mxu0 0
    %75 = vmatpush2.bf16.msra.mxu0 0
    %76 = vmatprep.subr.bf16.mxu0 0
    %77 = vmatpush2.bf16.msra.mxu0 0
    %78 = vmatprep.subr.bf16.mxu0 0
    %79 = vmatpush2.bf16.msra.mxu0 0
    %80 = vmatprep.subr.bf16.mxu0 0
    %81 = vmatpush2.bf16.msra.mxu0 0
    %82 = vmatprep.mubr.bf16.mxu0 0
    %83 = vmatmul.mubr.bf16.gmra.mxu0 %v48
    %v84 = vpop.f32.mrf.mxu0
    %v85 = vadd.f32 %v32, %v84
    %v86 = vpop.f32.mrf.mxu0
    %v87 = vpop.f32.mrf.mxu0
    %v88 = vpop.f32.mrf.mxu0
    %89 = vdwg.mxu0
    %v90 = vtanh.pop %v85
    %v91 = vpack.c.bf16 %v90, %v90
    %v92 = vld [vmem:[%s3] sm:$0xf]
    %v93 = vld [vmem:[%s3 + $0x4] sm:$0xf]
    %v94 = vld [vmem:[%s3 + $0x8] sm:$0xf]
    %v95 = vld [vmem:[%s3 + $0xc] sm:$0xf]
    %v96 = vld [vmem:[%s4] sm:$0x1]
    %v98 = vlaneseq
    %v99 = vshrl.u32 %v98, 7
    %v100 = vsub.s32 0, %v99
    %v101 = vrot.slane %v96, %v100
    %v107 = vunpack.c.l.b16 %v92
    %v108 = vunpack.c.l.b16 %v93
    %v109 = vunpack.c.l.b16 %v94
    %v110 = vunpack.c.l.b16 %v95
    %v111 = vpack.c.b16 %v108, %v107
    %v112 = vpack.c.b16 %v110, %v109
    %v116 = vsel %vm46, %v91, 0
    %118 = vmatprep.subr.bf16.mxu0 0
    %119 = vmatpush1.bf16.msra.mxu0 0
    %120 = vmatprep.subr.bf16.mxu0 0
    %121 = vmatpush1.bf16.msra.mxu0 0
    %122 = vmatprep.subr.bf16.mxu0 0
    %123 = vmatpush1.bf16.msra.mxu0 0
    %124 = vmatprep.subr.bf16.mxu0 0
    %125 = vmatpush1.bf16.msra.mxu0 0
    %126 = vmatprep.subr.bf16.mxu0 0
    %127 = vmatpush1.bf16.msra.mxu0 0
    %128 = vmatprep.subr.bf16.mxu0 0
    %129 = vmatpush1.bf16.msra.mxu0 0
    %130 = vmatprep.subr.bf16.mxu0 0
    %131 = vmatpush1.bf16.msra.mxu0 %v112
    %132 = vmatprep.subr.bf16.mxu0 0
    %133 = vmatpush1.bf16.msra.mxu0 %v111
    %134 = vmatprep.subr.bf16.mxu0 0
    %135 = vmatpush2.bf16.msra.mxu0 0
    %136 = vmatprep.subr.bf16.mxu0 0
    %137 = vmatpush2.bf16.msra.mxu0 0
    %138 = vmatprep.subr.bf16.mxu0 0
    %139 = vmatpush2.bf16.msra.mxu0 0
    %140 = vmatprep.subr.bf16.mxu0 0
    %141 = vmatpush2.bf16.msra.mxu0 0
    %142 = vmatprep.subr.bf16.mxu0 0
    %143 = vmatpush2.bf16.msra.mxu0 0
    %144 = vmatprep.subr.bf16.mxu0 0
    %145 = vmatpush2.bf16.msra.mxu0 0
    %146 = vmatprep.subr.bf16.mxu0 0
    %147 = vmatpush2.bf16.msra.mxu0 0
    %148 = vmatprep.subr.bf16.mxu0 0
    %149 = vmatpush2.bf16.msra.mxu0 0
    %150 = vmatprep.mubr.bf16.mxu0 0
    %151 = vmatmul.mubr.bf16.gmra.mxu0 %v116
    %v152 = vpop.f32.mrf.mxu0
    %v153 = vadd.f32 %v101, %v152
    %v154 = vpop.f32.mrf.mxu0
    %v155 = vpop.f32.mrf.mxu0
    %v156 = vpop.f32.mrf.mxu0
    %157 = vdwg.mxu0
    %158 = vst [vmem:[#allocation2] sm:$0x3] %v153
    // Predicated region
    $region22: #{bert_classifier_forward.11} parent=1 // pred_check
      _
    $region23: #{bert_classifier_forward.11} parent=1 // pred_check_branch
      %160 = sbr.rel (0) target = $region25
    $region24: #{bert_classifier_forward.11} parent=1 // pred_region
      %s162 = ssub.s32 32, 32
      %163 = vsyncadd [#allocation3], %s162
      %s165 = sshll.u32 [#allocation2], 4
      %s166 = int_to_ptr.vmem [resolvable:$true] %s165
      %168 = dma.vmem_to_hbm [thread:$0]  %s166, 32, %s5, [#allocation3]
    $region25: #{bert_classifier_forward.11} parent=1 // pred_fallthru
      _
    // Predicated region
    $region26: #{bert_classifier_forward.11} parent=1 // pred_check
      _
    $region27: #{bert_classifier_forward.11} parent=1 // pred_check_branch
      %170 = sbr.rel (0) target = $region29
    $region28: #{bert_classifier_forward.11} parent=1 // pred_region
      %171 = dma.done [#allocation3], 32
    $region29: #{bert_classifier_forward.11} parent=1 // pred_fallthru
      _
    %172 = vsyncpa [#allocation3], 1

// kernel: bert_classifier_forward.8
$region0: #{bert_classifier_forward.8}
  #allocation0 [shape = 'u32[]', space=smem, size = 0x4, offset = 0x4, fixed_abs, tag = 'smem constant byte address 0x4 - core index']
  #allocation1 [shape = 'u32[144,128]{1,0:T(1,128)}', space=vmem, size = 0x12000, scoped, tag = 'internal scratch']
  %s0 = inlined_call_operand.vmem [shape: bf16[16,32], index: 0, kind: input, shape index: {}]
  %s1 = inlined_call_operand.vmem [shape: bf16[32,64], index: 1, kind: input, shape index: {}]
  %s2 = inlined_call_operand.vmem [shape: f32[1,64], index: 2, kind: input, shape index: {}]
  %s3 = inlined_call_operand.vmem [shape: bf16[64,32], index: 3, kind: input, shape index: {}]
  %s4 = inlined_call_operand.vmem [shape: f32[1,32], index: 4, kind: input, shape index: {}]
  %s5 = inlined_call_operand.vmem [shape: f32[1,32], index: 5, kind: input, shape index: {}]
  %s6 = inlined_call_operand.vmem [shape: f32[1,32], index: 6, kind: input, shape index: {}]
  %s7 = inlined_call_operand.vmem [shape: bf16[16,32], index: 7, kind: output, shape index: {}]
  %s8 = sld [smem:[#allocation0]]
  $region38: #{bert_classifier_forward.8} parent=0
    _
  %s10 = ssub.s32 1, %s8
  %s11 = scalar_select 0, %s10, %s8
  // Predicated region
  $region2: #{bert_classifier_forward.8} parent=0 // pred_check
    _
  $region3: #{bert_classifier_forward.8} parent=0 // pred_check_branch
    %13 = sbr.rel (0) target = $region5
  $region4: #{bert_classifier_forward.8} parent=0 // pred_region
    _
  $region5: #{bert_classifier_forward.8} parent=0 // pred_fallthru
    _
  // Predicated region
  $region6: #{bert_classifier_forward.8} parent=0 // pred_check
    _
  $region7: #{bert_classifier_forward.8} parent=0 // pred_check_branch
    %15 = sbr.rel (0) target = $region9
  $region8: #{bert_classifier_forward.8} parent=0 // pred_region
    _
  $region9: #{bert_classifier_forward.8} parent=0 // pred_fallthru
    _
  // Predicated region
  $region10: #{bert_classifier_forward.8} parent=0 // pred_check
    _
  $region11: #{bert_classifier_forward.8} parent=0 // pred_check_branch
    %17 = sbr.rel (0) target = $region13
  $region12: #{bert_classifier_forward.8} parent=0 // pred_region
    _
  $region13: #{bert_classifier_forward.8} parent=0 // pred_fallthru
    _
  // Predicated region
  $region14: #{bert_classifier_forward.8} parent=0 // pred_check
    _
  $region15: #{bert_classifier_forward.8} parent=0 // pred_check_branch
    %19 = sbr.rel (0) target = $region17
  $region16: #{bert_classifier_forward.8} parent=0 // pred_region
    _
  $region17: #{bert_classifier_forward.8} parent=0 // pred_fallthru
    _
  // Predicated region
  $region18: #{bert_classifier_forward.8} parent=0 // pred_check
    _
  $region19: #{bert_classifier_forward.8} parent=0 // pred_check_branch
    %21 = sbr.rel (0) target = $region21
  $region20: #{bert_classifier_forward.8} parent=0 // pred_region
    _
  $region21: #{bert_classifier_forward.8} parent=0 // pred_fallthru
    _
  // Predicated region
  $region22: #{bert_classifier_forward.8} parent=0 // pred_check
    _
  $region23: #{bert_classifier_forward.8} parent=0 // pred_check_branch
    %23 = sbr.rel (0) target = $region25
  $region24: #{bert_classifier_forward.8} parent=0 // pred_region
    _
  $region25: #{bert_classifier_forward.8} parent=0 // pred_fallthru
    _
  // Predicated region
  $region26: #{bert_classifier_forward.8} parent=0 // pred_check
    _
  $region27: #{bert_classifier_forward.8} parent=0 // pred_check_branch
    %25 = sbr.rel (0) target = $region29
  $region28: #{bert_classifier_forward.8} parent=0 // pred_region
    _
  $region29: #{bert_classifier_forward.8} parent=0 // pred_fallthru
    _
  %v27 = vld [vmem:[%s0] sm:$0xf]
  %v28 = vld [vmem:[%s0 + $0x4] sm:$0xf]
  %v29 = vld [vmem:[%s1] sm:$0xf]
  %v30 = vld [vmem:[%s1 + $0x4] sm:$0xf]
  %v31 = vld [vmem:[%s1 + $0x8] sm:$0xf]
  %v32 = vld [vmem:[%s1 + $0xc] sm:$0xf]
  %v33 = vld [vmem:[%s2] sm:$0x1]
  %v35 = vlaneseq
  %v36 = vshrl.u32 %v35, 7
  %v37 = vsub.s32 0, %v36
  %v38 = vrot.slane %v33, %v37
  %v42 = vunpack.c.l.b16 %v27
  %v43 = vunpack.c.l.b16 %v28
  %v44 = vpack.c.b16 %v43, %v42
  %v49 = vunpack.c.l.b16 %v29
  %v50 = vunpack.c.l.b16 %v30
  %v51 = vunpack.c.l.b16 %v31
  %v52 = vunpack.c.l.b16 %v32
  %v53 = vpack.c.b16 %v50, %v49
  %v54 = vpack.c.b16 %v52, %v51
  %vm57 = vcmask 261120
  %v59 = vsel %vm57, %v44, 0
  %61 = vmatprep.subr.bf16.mxu0 0
  %62 = vmatpush1.bf16.msra.mxu0 0
  %63 = vmatprep.subr.bf16.mxu0 0
  %64 = vmatpush1.bf16.msra.mxu0 0
  %65 = vmatprep.subr.bf16.mxu0 0
  %66 = vmatpush1.bf16.msra.mxu0 0
  %67 = vmatprep.subr.bf16.mxu0 0
  %68 = vmatpush1.bf16.msra.mxu0 0
  %69 = vmatprep.subr.bf16.mxu0 0
  %70 = vmatpush1.bf16.msra.mxu0 0
  %71 = vmatprep.subr.bf16.mxu0 0
  %72 = vmatpush1.bf16.msra.mxu0 0
  %73 = vmatprep.subr.bf16.mxu0 0
  %74 = vmatpush1.bf16.msra.mxu0 %v54
  %75 = vmatprep.subr.bf16.mxu0 0
  %76 = vmatpush1.bf16.msra.mxu0 %v53
  %77 = vmatprep.subr.bf16.mxu0 0
  %78 = vmatpush2.bf16.msra.mxu0 0
  %79 = vmatprep.subr.bf16.mxu0 0
  %80 = vmatpush2.bf16.msra.mxu0 0
  %81 = vmatprep.subr.bf16.mxu0 0
  %82 = vmatpush2.bf16.msra.mxu0 0
  %83 = vmatprep.subr.bf16.mxu0 0
  %84 = vmatpush2.bf16.msra.mxu0 0
  %85 = vmatprep.subr.bf16.mxu0 0
  %86 = vmatpush2.bf16.msra.mxu0 0
  %87 = vmatprep.subr.bf16.mxu0 0
  %88 = vmatpush2.bf16.msra.mxu0 0
  %89 = vmatprep.subr.bf16.mxu0 0
  %90 = vmatpush2.bf16.msra.mxu0 0
  %91 = vmatprep.subr.bf16.mxu0 0
  %92 = vmatpush2.bf16.msra.mxu0 0
  %93 = vmatprep.mubr.bf16.mxu0 0
  %94 = vmatmul.mubr.bf16.gmra.mxu0 %v59
  %v95 = vpop.f32.mrf.mxu0
  %v96 = vadd.f32 %v38, %v95
  %v97 = vpop.f32.mrf.mxu0
  %v98 = vpop.f32.mrf.mxu0
  %v99 = vadd.f32 %v38, %v98
  %v100 = vpop.f32.mrf.mxu0
  %101 = vdwg.mxu0
  %v102 = vmul.f32 %v96, %v96
  %v103 = vmul.f32 %v99, %v99
  %v104 = vmul.f32 %v96, %v102
  %v105 = vmul.f32 %v99, %v103
  %v106 = vmul.f32 %v104, 0.044715
  %v107 = vmul.f32 %v105, 0.044715
  %v108 = vadd.f32 %v96, %v106
  %v109 = vadd.f32 %v99, %v107
  %v110 = vmul.f32 %v108, 0.7978846
  %v111 = vmul.f32 %v109, 0.7978846
  %v112 = vtanh.pop %v110
  %v113 = vtanh.pop %v111
  %v114 = vadd.f32 %v112, 1.0
  %v115 = vadd.f32 %v113, 1.0
  %v116 = vmul.f32 %v114, 0.5
  %v117 = vmul.f32 %v115, 0.5
  %v118 = vmul.f32 %v96, %v116
  %v119 = vmul.f32 %v99, %v117
  %v120 = vpack.c.bf16 %v119, %v118
  %v121 = vld [vmem:[%s3] sm:$0xf]
  %v122 = vld [vmem:[%s3 + $0x4] sm:$0xf]
  %v123 = vld [vmem:[%s3 + $0x8] sm:$0xf]
  %v124 = vld [vmem:[%s3 + $0xc] sm:$0xf]
  %v125 = vld [vmem:[%s3 + $0x10] sm:$0xf]
  %v126 = vld [vmem:[%s3 + $0x14] sm:$0xf]
  %v127 = vld [vmem:[%s3 + $0x18] sm:$0xf]
  %v128 = vld [vmem:[%s3 + $0x1c] sm:$0xf]
  %v129 = vld [vmem:[%s4] sm:$0x1]
  %v131 = vlaneseq
  %v132 = vshrl.u32 %v131, 7
  %v133 = vsub.s32 0, %v132
  %v134 = vrot.slane %v129, %v133
  %v144 = vunpack.c.l.b16 %v121
  %v145 = vunpack.c.l.b16 %v122
  %v146 = vunpack.c.l.b16 %v123
  %v147 = vunpack.c.l.b16 %v124
  %v148 = vunpack.c.l.b16 %v125
  %v149 = vunpack.c.l.b16 %v126
  %v150 = vunpack.c.l.b16 %v127
  %v151 = vunpack.c.l.b16 %v128
  %v152 = vpack.c.b16 %v145, %v144
  %v153 = vpack.c.b16 %v147, %v146
  %v154 = vpack.c.b16 %v149, %v148
  %v155 = vpack.c.b16 %v151, %v150
  %vm160 = vcmask 523264
  %v162 = vsel %vm160, %v120, 0
  %164 = vmatprep.subr.bf16.mxu0 0
  %165 = vmatpush1.bf16.msra.mxu0 0
  %166 = vmatprep.subr.bf16.mxu0 0
  %167 = vmatpush1.bf16.msra.mxu0 0
  %168 = vmatprep.subr.bf16.mxu0 0
  %169 = vmatpush1.bf16.msra.mxu0 0
  %170 = vmatprep.subr.bf16.mxu0 0
  %171 = vmatpush1.bf16.msra.mxu0 0
  %172 = vmatprep.subr.bf16.mxu0 0
  %173 = vmatpush1.bf16.msra.mxu0 %v155
  %174 = vmatprep.subr.bf16.mxu0 0
  %175 = vmatpush1.bf16.msra.mxu0 %v154
  %176 = vmatprep.subr.bf16.mxu0 0
  %177 = vmatpush1.bf16.msra.mxu0 %v153
  %178 = vmatprep.subr.bf16.mxu0 0
  %179 = vmatpush1.bf16.msra.mxu0 %v152
  %180 = vmatprep.subr.bf16.mxu0 0
  %181 = vmatpush2.bf16.msra.mxu0 0
  %182 = vmatprep.subr.bf16.mxu0 0
  %183 = vmatpush2.bf16.msra.mxu0 0
  %184 = vmatprep.subr.bf16.mxu0 0
  %185 = vmatpush2.bf16.msra.mxu0 0
  %186 = vmatprep.subr.bf16.mxu0 0
  %187 = vmatpush2.bf16.msra.mxu0 0
  %188 = vmatprep.subr.bf16.mxu0 0
  %189 = vmatpush2.bf16.msra.mxu0 0
  %190 = vmatprep.subr.bf16.mxu0 0
  %191 = vmatpush2.bf16.msra.mxu0 0
  %192 = vmatprep.subr.bf16.mxu0 0
  %193 = vmatpush2.bf16.msra.mxu0 0
  %194 = vmatprep.subr.bf16.mxu0 0
  %195 = vmatpush2.bf16.msra.mxu0 0
  %196 = vmatprep.mubr.bf16.mxu0 0
  %197 = vmatmul.mubr.bf16.gmra.mxu0 %v162
  %v198 = vpop.f32.mrf.mxu0
  %v199 = vadd.f32 %v134, %v198
  %v200 = vpop.f32.mrf.mxu0
  %v201 = vpop.f32.mrf.mxu0
  %v202 = vadd.f32 %v134, %v201
  %v203 = vpop.f32.mrf.mxu0
  %204 = vdwg.mxu0
  %v205 = vunpack.c.l.bf16 %v27
  %v206 = vunpack.c.l.bf16 %v28
  %v207 = vadd.f32 %v199, %v205
  %v208 = vadd.f32 %v202, %v206
  %v209 = vld [vmem:[%s5] sm:$0x1]
  %v210 = vld [vmem:[%s6] sm:$0x1]
  %v211 = vsel %vm57, %v207, 0.0
  %212 = vadd.xlane.f32.xlu0 %v211
  %v213 = vpop.xlane.xlu0 %212
  %v214 = vsel %vm57, %v208, 0.0
  %215 = vadd.xlane.f32.xlu0 %v214
  %v216 = vpop.xlane.xlu0 %215
  %v217 = vrcp.pop 32.0
  %v218 = vmul.f32 %v213, %v217
  %v219 = vmul.f32 %v216, %v217
  %v220 = vsub.f32 %v207, %v218
  %v221 = vsub.f32 %v208, %v219
  %v222 = vmul.f32 %v220, %v220
  %v223 = vmul.f32 %v221, %v221
  %v224 = vsel %vm57, %v222, 0.0
  %225 = vadd.xlane.f32.xlu0 %v224
  %v226 = vpop.xlane.xlu0 %225
  %v227 = vsel %vm57, %v223, 0.0
  %228 = vadd.xlane.f32.xlu0 %v227
  %v229 = vpop.xlane.xlu0 %228
  %v230 = vmul.f32 %v226, %v217
  %v231 = vmul.f32 %v229, %v217
  %v232 = vadd.f32 %v230, 1e-12
  %v233 = vadd.f32 %v231, 1e-12
  %v234 = vrsqrt.pop %v232
  %v235 = vrsqrt.pop %v233
  %v236 = vmul.f32 %v220, %v234
  %v237 = vmul.f32 %v221, %v235
  %v239 = vlaneseq
  %v240 = vshrl.u32 %v239, 7
  %v241 = vsub.s32 0, %v240
  %v242 = vrot.slane %v209, %v241
  %v244 = vmul.f32 %v236, %v242
  %v245 = vmul.f32 %v237, %v242
  %v247 = vlaneseq
  %v248 = vshrl.u32 %v247, 7
  %v249 = vsub.s32 0, %v248
  %v250 = vrot.slane %v210, %v249
  %v252 = vadd.f32 %v244, %v250
  %v253 = vadd.f32 %v245, %v250
  %v254 = vpack.c.bf16 %v253, %v252
  %v256 = vunpack.c.l.b16 %v254
  %v257 = vunpack.c.h.b16 %v254
  %v258 = vpack.c.b16 %v256, %v256
  %v259 = vpack.c.b16 %v257, %v257
  %vm262 = vcmask 257024
  %263 = vst.msk [vmem:[%s7] sm:$0xf] %vm262, %v258
  %264 = vst.msk [vmem:[%s7 + $0x4] sm:$0xf] %vm262, %v259
  // Predicated region
  $region30: #{bert_classifier_forward.8} parent=0 // pred_check
    _
  $region31: #{bert_classifier_forward.8} parent=0 // pred_check_branch
    %266 = sbr.rel (0) target = $region33
  $region32: #{bert_classifier_forward.8} parent=0 // pred_region
    _
  $region33: #{bert_classifier_forward.8} parent=0 // pred_fallthru
    _
  // Predicated region
  $region34: #{bert_classifier_forward.8} parent=0 // pred_check
    _
  $region35: #{bert_classifier_forward.8} parent=0 // pred_check_branch
    %268 = sbr.rel (0) target = $region37
  $region36: #{bert_classifier_forward.8} parent=0 // pred_region
    _
  $region37: #{bert_classifier_forward.8} parent=0 // pred_fallthru
    _

// kernel: bert_classifier_forward.6
$region0: #{bert_classifier_forward.6}
  #allocation0 [shape = 'u32[]', space=smem, size = 0x4, offset = 0x4, fixed_abs, tag = 'smem constant byte address 0x4 - core index']
  #allocation1 [shape = 'u32[144,128]{1,0:T(1,128)}', space=vmem, size = 0x12000, scoped, tag = 'internal scratch']
  %s0 = inlined_call_operand.vmem [shape: f32[16,32], index: 0, kind: input, shape index: {}]
  %s1 = inlined_call_operand.vmem [shape: f32[1,32], index: 1, kind: input, shape index: {}]
  %s2 = inlined_call_operand.vmem [shape: f32[1,32], index: 2, kind: input, shape index: {}]
  %s3 = inlined_call_operand.vmem [shape: bf16[16,32], index: 3, kind: output, shape index: {}]
  %s4 = sld [smem:[#allocation0]]
  $region22: #{bert_classifier_forward.6} parent=0
    _
  %s6 = ssub.s32 1, %s4
  %s7 = scalar_select 0, %s6, %s4
  // Predicated region
  $region2: #{bert_classifier_forward.6} parent=0 // pred_check
    _
  $region3: #{bert_classifier_forward.6} parent=0 // pred_check_branch
    %9 = sbr.rel (0) target = $region5
  $region4: #{bert_classifier_forward.6} parent=0 // pred_region
    _
  $region5: #{bert_classifier_forward.6} parent=0 // pred_fallthru
    _
  // Predicated region
  $region6: #{bert_classifier_forward.6} parent=0 // pred_check
    _
  $region7: #{bert_classifier_forward.6} parent=0 // pred_check_branch
    %11 = sbr.rel (0) target = $region9
  $region8: #{bert_classifier_forward.6} parent=0 // pred_region
    _
  $region9: #{bert_classifier_forward.6} parent=0 // pred_fallthru
    _
  // Predicated region
  $region10: #{bert_classifier_forward.6} parent=0 // pred_check
    _
  $region11: #{bert_classifier_forward.6} parent=0 // pred_check_branch
    %13 = sbr.rel (0) target = $region13
  $region12: #{bert_classifier_forward.6} parent=0 // pred_region
    _
  $region13: #{bert_classifier_forward.6} parent=0 // pred_fallthru
    _
  %v14 = vld [vmem:[%s0] sm:$0xff]
  %v15 = vld [vmem:[%s0 + $0x8] sm:$0xff]
  %v16 = vld [vmem:[%s1] sm:$0x1]
  %v17 = vld [vmem:[%s2] sm:$0x1]
  %vm18 = vcmask 261120
  %v19 = vsel %vm18, %v14, 0.0
  %20 = vadd.xlane.f32.xlu0 %v19
  %v21 = vpop.xlane.xlu0 %20
  %v22 = vsel %vm18, %v15, 0.0
  %23 = vadd.xlane.f32.xlu0 %v22
  %v24 = vpop.xlane.xlu0 %23
  %v25 = vrcp.pop 32.0
  %v26 = vmul.f32 %v21, %v25
  %v27 = vmul.f32 %v24, %v25
  %v28 = vsub.f32 %v14, %v26
  %v29 = vsub.f32 %v15, %v27
  %v30 = vmul.f32 %v28, %v28
  %v31 = vmul.f32 %v29, %v29
  %v32 = vsel %vm18, %v30, 0.0
  %33 = vadd.xlane.f32.xlu0 %v32
  %v34 = vpop.xlane.xlu0 %33
  %v35 = vsel %vm18, %v31, 0.0
  %36 = vadd.xlane.f32.xlu0 %v35
  %v37 = vpop.xlane.xlu0 %36
  %v38 = vmul.f32 %v34, %v25
  %v39 = vmul.f32 %v37, %v25
  %v40 = vadd.f32 %v38, 1e-12
  %v41 = vadd.f32 %v39, 1e-12
  %v42 = vrsqrt.pop %v40
  %v43 = vrsqrt.pop %v41
  %v44 = vmul.f32 %v28, %v42
  %v45 = vmul.f32 %v29, %v43
  %v47 = vlaneseq
  %v48 = vshrl.u32 %v47, 7
  %v49 = vsub.s32 0, %v48
  %v50 = vrot.slane %v16, %v49
  %v52 = vmul.f32 %v44, %v50
  %v53 = vmul.f32 %v45, %v50
  %v55 = vlaneseq
  %v56 = vshrl.u32 %v55, 7
  %v57 = vsub.s32 0, %v56
  %v58 = vrot.slane %v17, %v57
  %v60 = vadd.f32 %v52, %v58
  %v61 = vadd.f32 %v53, %v58
  %v62 = vpack.c.bf16 %v61, %v60
  %v64 = vunpack.c.l.b16 %v62
  %v65 = vunpack.c.h.b16 %v62
  %v66 = vpack.c.b16 %v64, %v64
  %v67 = vpack.c.b16 %v65, %v65
  %vm70 = vcmask 257024
  %71 = vst.msk [vmem:[%s3] sm:$0xf] %vm70, %v66
  %72 = vst.msk [vmem:[%s3 + $0x4] sm:$0xf] %vm70, %v67
  // Predicated region
  $region14: #{bert_classifier_forward.6} parent=0 // pred_check
    _
  $region15: #{bert_classifier_forward.6} parent=0 // pred_check_branch
    %74 = sbr.rel (0) target = $region17
  $region16: #{bert_classifier_forward.6} parent=0 // pred_region
    _
  $region17: #{bert_classifier_forward.6} parent=0 // pred_fallthru
    _
  // Predicated region
  $region18: #{bert_classifier_forward.6} parent=0 // pred_check
    _
  $region19: #{bert_classifier_forward.6} parent=0 // pred_check_branch
    %76 = sbr.rel (0) target = $region21
  $region20: #{bert_classifier_forward.6} parent=0 // pred_region
    _
  $region21: #{bert_classifier_forward.6} parent=0 // pred_fallthru
    _

// kernel: bert_classifier_forward.7
$region0: #{bert_classifier_forward.7}
  #allocation0 [shape = 'u32[]', space=smem, size = 0x4, offset = 0x4, fixed_abs, tag = 'smem constant byte address 0x4 - core index']
  #allocation1 [shape = 'u32[144,128]{1,0:T(1,128)}', space=vmem, size = 0x12000, scoped, tag = 'internal scratch']
  %s0 = inlined_call_operand.vmem [shape: bf16[2,8,32], index: 0, kind: input, shape index: {}]
  %s1 = inlined_call_operand.vmem [shape: bf16[32,96], index: 1, kind: input, shape index: {}]
  %s2 = inlined_call_operand.vmem [shape: f32[1,96], index: 2, kind: input, shape index: {}]
  %s3 = inlined_call_operand.vmem [shape: bf16[32,32], index: 3, kind: input, shape index: {}]
  %s4 = inlined_call_operand.vmem [shape: f32[1,32], index: 4, kind: input, shape index: {}]
  %s5 = inlined_call_operand.vmem [shape: f32[1,32], index: 5, kind: input, shape index: {}]
  %s6 = inlined_call_operand.vmem [shape: f32[1,32], index: 6, kind: input, shape index: {}]
  %s7 = inlined_call_operand.vmem [shape: bf16[2,8,32], index: 7, kind: output, shape index: {}]
  %s8 = sld [smem:[#allocation0]]
  $region61: #{bert_classifier_forward.7} parent=0
    _
  %s10 = ssub.s32 1, %s8
  %s11 = scalar_select 0, %s10, %s8
  loop: start=0, step=1, limit=4
  $region2: #{bert_classifier_forward.7} parent=0 // loop_pre_header
    _
  $region3: #{bert_classifier_forward.7} parent=0 // loop_header
    %s13 = sphi 0, %s17
    %p14 = scmp.ge.s32.totalorder %s13, 4
    %s23 = sphi 0, %s25
    %s26 = sphi 0, %s23
    %s27 = sphi 0, %s26
    %s43 = sphi 0, %s27
    %s47 = sphi 0, %s47
    %s49 = sphi 0, %s47
    %s50 = sphi 0, %s49
    %s64 = sphi 0, %s50
    %s68 = sphi 0, %s68
    %s70 = sphi 0, %s68
    %s71 = sphi 0, %s70
    %s85 = sphi 0, %s71
    %s89 = sphi 0, %s89
    %s91 = sphi 0, %s89
    %s92 = sphi 0, %s91
    %s106 = sphi 0, %s92
    %s110 = sphi 0, %s110
    %s112 = sphi 0, %s110
    %s113 = sphi 0, %s112
    %s127 = sphi 0, %s113
    %s131 = sphi 0, %s131
    %s133 = sphi 0, %s131
    %s134 = sphi 0, %s133
    %s148 = sphi 0, %s134
    %s152 = sphi 0, %s152
    %s154 = sphi 0, %s152
    %s155 = sphi 0, %s154
    %s169 = sphi 0, %s155
    %s175 = sphi 0, %s177
    %s178 = sphi 0, %s175
    %s179 = sphi 0, %s178
    %s195 = sphi 0, %s179
  $region4: #{bert_classifier_forward.7} parent=0 // loop_header_branch
    %16 = sbr.rel (%p14) target = $region8
  $region5: #{bert_classifier_forward.7} parent=0 // loop_body
    %s18 = ssub.s32 %s13, 1
    %s19 = ssub.s32 %s13, 2
    %s20 = sadd.s32 %s13, 1
    %s21 = ssub.s32 %s13, %s20
    %p22 = scmp.eq.s32.totalorder %s21, 0
    %s24 = sadd.s32 %s23, 1
    %s25 = scalar_select %p22, %s23, %s24
    %p28 = pneg %p22
    %p29 = scmp.eq.s32.totalorder %s13, 1
    %p30 = por %p28, %p29
    %p31 = scmp.ne.s32.totalorder %s23, %s26
    %p32 = scmp.eq.s32.totalorder %s13, 0
    %p33 = por %p31, %p32
    %p34 = scmp.ne.s32.totalorder %s23, %s26
    %p35 = scmp.eq.s32.totalorder %s18, 1
    %p36 = por %p34, %p35
    %p37 = scmp.ne.s32.totalorder %s26, %s27
    %p38 = scmp.eq.s32.totalorder %s18, 0
    %p39 = por %p37, %p38
    %p40 = scmp.ne.s32.totalorder %s26, %s27
    %p41 = scmp.eq.s32.totalorder %s19, 1
    %p42 = por %p40, %p41
    %p44 = scmp.ne.s32.totalorder %s27, %s43
    %p45 = scmp.eq.s32.totalorder %s19, 0
    %p46 = por %p44, %p45
    %s48 = sadd.s32 %s47, 1
    %p51 = scmp.eq.s32.totalorder %s13, 1
    %p52 = scmp.ne.s32.totalorder %s47, %s49
    %p53 = scmp.eq.s32.totalorder %s13, 0
    %p54 = por %p52, %p53
    %p55 = scmp.ne.s32.totalorder %s47, %s49
    %p56 = scmp.eq.s32.totalorder %s18, 1
    %p57 = por %p55, %p56
    %p58 = scmp.ne.s32.totalorder %s49, %s50
    %p59 = scmp.eq.s32.totalorder %s18, 0
    %p60 = por %p58, %p59
    %p61 = scmp.ne.s32.totalorder %s49, %s50
    %p62 = scmp.eq.s32.totalorder %s19, 1
    %p63 = por %p61, %p62
    %p65 = scmp.ne.s32.totalorder %s50, %s64
    %p66 = scmp.eq.s32.totalorder %s19, 0
    %p67 = por %p65, %p66
    %s69 = sadd.s32 %s68, 1
    %p72 = scmp.eq.s32.totalorder %s13, 1
    %p73 = scmp.ne.s32.totalorder %s68, %s70
    %p74 = scmp.eq.s32.totalorder %s13, 0
    %p75 = por %p73, %p74
    %p76 = scmp.ne.s32.totalorder %s68, %s70
    %p77 = scmp.eq.s32.totalorder %s18, 1
    %p78 = por %p76, %p77
    %p79 = scmp.ne.s32.totalorder %s70, %s71
    %p80 = scmp.eq.s32.totalorder %s18, 0
    %p81 = por %p79, %p80
    %p82 = scmp.ne.s32.totalorder %s70, %s71
    %p83 = scmp.eq.s32.totalorder %s19, 1
    %p84 = por %p82, %p83
    %p86 = scmp.ne.s32.totalorder %s71, %s85
    %p87 = scmp.eq.s32.totalorder %s19, 0
    %p88 = por %p86, %p87
    %s90 = sadd.s32 %s89, 1
    %p93 = scmp.eq.s32.totalorder %s13, 1
    %p94 = scmp.ne.s32.totalorder %s89, %s91
    %p95 = scmp.eq.s32.totalorder %s13, 0
    %p96 = por %p94, %p95
    %p97 = scmp.ne.s32.totalorder %s89, %s91
    %p98 = scmp.eq.s32.totalorder %s18, 1
    %p99 = por %p97, %p98
    %p100 = scmp.ne.s32.totalorder %s91, %s92
    %p101 = scmp.eq.s32.totalorder %s18, 0
    %p102 = por %p100, %p101
    %p103 = scmp.ne.s32.totalorder %s91, %s92
    %p104 = scmp.eq.s32.totalorder %s19, 1
    %p105 = por %p103, %p104
    %p107 = scmp.ne.s32.totalorder %s92, %s106
    %p108 = scmp.eq.s32.totalorder %s19, 0
    %p109 = por %p107, %p108
    %s111 = sadd.s32 %s110, 1
    %p114 = scmp.eq.s32.totalorder %s13, 1
    %p115 = scmp.ne.s32.totalorder %s110, %s112
    %p116 = scmp.eq.s32.totalorder %s13, 0
    %p117 = por %p115, %p116
    %p118 = scmp.ne.s32.totalorder %s110, %s112
    %p119 = scmp.eq.s32.totalorder %s18, 1
    %p120 = por %p118, %p119
    %p121 = scmp.ne.s32.totalorder %s112, %s113
    %p122 = scmp.eq.s32.totalorder %s18, 0
    %p123 = por %p121, %p122
    %p124 = scmp.ne.s32.totalorder %s112, %s113
    %p125 = scmp.eq.s32.totalorder %s19, 1
    %p126 = por %p124, %p125
    %p128 = scmp.ne.s32.totalorder %s113, %s127
    %p129 = scmp.eq.s32.totalorder %s19, 0
    %p130 = por %p128, %p129
    %s132 = sadd.s32 %s131, 1
    %p135 = scmp.eq.s32.totalorder %s13, 1
    %p136 = scmp.ne.s32.totalorder %s131, %s133
    %p137 = scmp.eq.s32.totalorder %s13, 0
    %p138 = por %p136, %p137
    %p139 = scmp.ne.s32.totalorder %s131, %s133
    %p140 = scmp.eq.s32.totalorder %s18, 1
    %p141 = por %p139, %p140
    %p142 = scmp.ne.s32.totalorder %s133, %s134
    %p143 = scmp.eq.s32.totalorder %s18, 0
    %p144 = por %p142, %p143
    %p145 = scmp.ne.s32.totalorder %s133, %s134
    %p146 = scmp.eq.s32.totalorder %s19, 1
    %p147 = por %p145, %p146
    %p149 = scmp.ne.s32.totalorder %s134, %s148
    %p150 = scmp.eq.s32.totalorder %s19, 0
    %p151 = por %p149, %p150
    %s153 = sadd.s32 %s152, 1
    %p156 = scmp.eq.s32.totalorder %s13, 1
    %p157 = scmp.ne.s32.totalorder %s152, %s154
    %p158 = scmp.eq.s32.totalorder %s13, 0
    %p159 = por %p157, %p158
    %p160 = scmp.ne.s32.totalorder %s152, %s154
    %p161 = scmp.eq.s32.totalorder %s18, 1
    %p162 = por %p160, %p161
    %p163 = scmp.ne.s32.totalorder %s154, %s155
    %p164 = scmp.eq.s32.totalorder %s18, 0
    %p165 = por %p163, %p164
    %p166 = scmp.ne.s32.totalorder %s154, %s155
    %p167 = scmp.eq.s32.totalorder %s19, 1
    %p168 = por %p166, %p167
    %p170 = scmp.ne.s32.totalorder %s155, %s169
    %p171 = scmp.eq.s32.totalorder %s19, 0
    %p172 = por %p170, %p171
    %s173 = ssub.s32 %s13, %s20
    %p174 = scmp.eq.s32.totalorder %s173, 0
    %s176 = sadd.s32 %s175, 1
    %s177 = scalar_select %p174, %s175, %s176
    %p180 = pneg %p174
    %p181 = scmp.eq.s32.totalorder %s13, 1
    %p182 = por %p180, %p181
    %p183 = scmp.ne.s32.totalorder %s175, %s178
    %p184 = scmp.eq.s32.totalorder %s13, 0
    %p185 = por %p183, %p184
    %p186 = scmp.ne.s32.totalorder %s175, %s178
    %p187 = scmp.eq.s32.totalorder %s18, 1
    %p188 = por %p186, %p187
    %p189 = scmp.ne.s32.totalorder %s178, %s179
    %p190 = scmp.eq.s32.totalorder %s18, 0
    %p191 = por %p189, %p190
    %p192 = scmp.ne.s32.totalorder %s178, %s179
    %p193 = scmp.eq.s32.totalorder %s19, 1
    %p194 = por %p192, %p193
    %p196 = scmp.ne.s32.totalorder %s179, %s195
    %p197 = scmp.eq.s32.totalorder %s19, 0
    %p198 = por %p196, %p197
    %p199 = scmp.le.s32.totalorder 1, %s13
    %p200 = scmp.lt.s32.totalorder %s13, 3
    %p201 = pnand %p199, %p200
    %p202 = pneg %p201
    // Predicated region
    $region9: #{bert_classifier_forward.7} parent=5 // pred_check
      _
    $region10: #{bert_classifier_forward.7} parent=5 // pred_check_branch
      %204 = sbr.rel (%p201) target = $region12
    $region11: #{bert_classifier_forward.7} parent=5 // pred_region
      %s205 = ssub.s32 %s13, 1
      // Predicated region
      $region13: #{bert_classifier_forward.7} parent=11 // pred_check
        %p206 = pneg %p60
      $region14: #{bert_classifier_forward.7} parent=11 // pred_check_branch
        %208 = sbr.rel (%p206) target = $region16
      $region15: #{bert_classifier_forward.7} parent=11 // pred_region
        _
      $region16: #{bert_classifier_forward.7} parent=11 // pred_fallthru
        _
      // Predicated region
      $region17: #{bert_classifier_forward.7} parent=11 // pred_check
        %p209 = pneg %p81
      $region18: #{bert_classifier_forward.7} parent=11 // pred_check_branch
        %211 = sbr.rel (%p209) target = $region20
      $region19: #{bert_classifier_forward.7} parent=11 // pred_region
        _
      $region20: #{bert_classifier_forward.7} parent=11 // pred_fallthru
        _
      // Predicated region
      $region21: #{bert_classifier_forward.7} parent=11 // pred_check
        %p212 = pneg %p102
      $region22: #{bert_classifier_forward.7} parent=11 // pred_check_branch
        %214 = sbr.rel (%p212) target = $region24
      $region23: #{bert_classifier_forward.7} parent=11 // pred_region
        _
      $region24: #{bert_classifier_forward.7} parent=11 // pred_fallthru
        _
      // Predicated region
      $region25: #{bert_classifier_forward.7} parent=11 // pred_check
        %p215 = pneg %p123
      $region26: #{bert_classifier_forward.7} parent=11 // pred_check_branch
        %217 = sbr.rel (%p215) target = $region28
      $region27: #{bert_classifier_forward.7} parent=11 // pred_region
        _
      $region28: #{bert_classifier_forward.7} parent=11 // pred_fallthru
        _
      // Predicated region
      $region29: #{bert_classifier_forward.7} parent=11 // pred_check
        %p218 = pneg %p144
      $region30: #{bert_classifier_forward.7} parent=11 // pred_check_branch
        %220 = sbr.rel (%p218) target = $region32
      $region31: #{bert_classifier_forward.7} parent=11 // pred_region
        _
      $region32: #{bert_classifier_forward.7} parent=11 // pred_fallthru
        _
      // Predicated region
      $region33: #{bert_classifier_forward.7} parent=11 // pred_check
        %p221 = pneg %p165
      $region34: #{bert_classifier_forward.7} parent=11 // pred_check_branch
        %223 = sbr.rel (%p221) target = $region36
      $region35: #{bert_classifier_forward.7} parent=11 // pred_region
        _
      $region36: #{bert_classifier_forward.7} parent=11 // pred_fallthru
        _
    $region12: #{bert_classifier_forward.7} parent=5 // pred_fallthru
      _
    %p224 = scmp.lt.s32.totalorder %s13, 2
    // Predicated region
    $region37: #{bert_classifier_forward.7} parent=5 // pred_check
      %p225 = pneg %p224
    $region38: #{bert_classifier_forward.7} parent=5 // pred_check_branch
      %227 = sbr.rel (%p225) target = $region40
    $region39: #{bert_classifier_forward.7} parent=5 // pred_region
      // Predicated region
      $region41: #{bert_classifier_forward.7} parent=39 // pred_check
        %p228 = pneg %p33
      $region42: #{bert_classifier_forward.7} parent=39 // pred_check_branch
        %230 = sbr.rel (%p228) target = $region44
      $region43: #{bert_classifier_forward.7} parent=39 // pred_region
        %p231 = scmp.lt.s32.totalorder %s13, 1
        %s232 = scalar_select %p231, %s13, 1
        %s233 = smul.addr %s232, 4
        %s234 = scalar_lea.vmem %s0, %s233
      $region44: #{bert_classifier_forward.7} parent=39 // pred_fallthru
        _
    $region40: #{bert_classifier_forward.7} parent=5 // pred_fallthru
      _
    %p235 = scmp.le.s32.totalorder 1, %s13
    %p236 = scmp.lt.s32.totalorder %s13, 3
    %p237 = pnand %p235, %p236
    %p238 = pneg %p237
    // Predicated region
    $region45: #{bert_classifier_forward.7} parent=5 // pred_check
      _
    $region46: #{bert_classifier_forward.7} parent=5 // pred_check_branch
      %240 = sbr.rel (%p237) target = $region48
    $region47: #{bert_classifier_forward.7} parent=5 // pred_region
      %s241 = ssub.s32 %s13, 1
      %p242 = scmp.lt.s32.totalorder %s18, 1
      %s243 = scalar_select %p242, %s18, 1
      %s244 = smul.addr %s243, 4
      %s245 = scalar_lea.vmem %s0, %s244
      %p246 = pneg %p39
      %p247 = pneg %p36
      %p248 = pneg %p60
      %p249 = pneg %p57
      %p250 = pneg %p81
      %p251 = pneg %p78
      %p252 = pneg %p102
      %p253 = pneg %p99
      %p254 = pneg %p123
      %p255 = pneg %p120
      %p256 = pneg %p144
      %p257 = pneg %p141
      %p258 = pneg %p165
      %p259 = pneg %p162
      %p260 = pneg %p191
      %p261 = pneg %p188
      %p262 = scmp.lt.s32.totalorder %s18, 1
      %s263 = scalar_select %p262, %s18, 1
      %s264 = smul.addr %s263, 4
      %s265 = scalar_lea.vmem %s7, %s264
      %p266 = scmp.lt.s32.totalorder %s18, 1
      %s267 = scalar_select %p266, %s18, 1
      %s268 = smul.addr %s267, 4
      %s269 = scalar_lea.vmem %s0, %s268
      %p270 = scmp.lt.s32.totalorder %s18, 1
      %s271 = scalar_select %p270, %s18, 1
      %s272 = smul.addr %s271, 4
      %s273 = scalar_lea.vmem %s7, %s272
      %v275 = vld [vmem:[%s269] sm:$0xf]
      %v276 = vld [vmem:[%s1] sm:$0xf]
      %v277 = vld [vmem:[%s1 + $0x4] sm:$0xf]
      %v278 = vld [vmem:[%s1 + $0x8] sm:$0xf]
      %v279 = vld [vmem:[%s1 + $0xc] sm:$0xf]
      %v280 = vld [vmem:[%s2] sm:$0x1]
      %v282 = vlaneseq
      %v283 = vshrl.u32 %v282, 7
      %v284 = vsub.s32 0, %v283
      %v285 = vrot.slane %v280, %v284
      %v291 = vunpack.c.l.b16 %v276
      %v292 = vunpack.c.l.b16 %v277
      %v293 = vunpack.c.l.b16 %v278
      %v294 = vunpack.c.l.b16 %v279
      %v295 = vpack.c.b16 %v292, %v291
      %v296 = vpack.c.b16 %v294, %v293
      %vm299 = vcmask 261120
      %v301 = vsel %vm299, %v275, 0
      %303 = vmatprep.subr.bf16.mxu0 0
      %304 = vmatpush1.bf16.msra.mxu0 0
      %305 = vmatprep.subr.bf16.mxu0 0
      %306 = vmatpush1.bf16.msra.mxu0 0
      %307 = vmatprep.subr.bf16.mxu0 0
      %308 = vmatpush1.bf16.msra.mxu0 0
      %309 = vmatprep.subr.bf16.mxu0 0
      %310 = vmatpush1.bf16.msra.mxu0 0
      %311 = vmatprep.subr.bf16.mxu0 0
      %312 = vmatpush1.bf16.msra.mxu0 0
      %313 = vmatprep.subr.bf16.mxu0 0
      %314 = vmatpush1.bf16.msra.mxu0 0
      %315 = vmatprep.subr.bf16.mxu0 0
      %316 = vmatpush1.bf16.msra.mxu0 %v296
      %317 = vmatprep.subr.bf16.mxu0 0
      %318 = vmatpush1.bf16.msra.mxu0 %v295
      %319 = vmatprep.subr.bf16.mxu0 0
      %320 = vmatpush2.bf16.msra.mxu0 0
      %321 = vmatprep.subr.bf16.mxu0 0
      %322 = vmatpush2.bf16.msra.mxu0 0
      %323 = vmatprep.subr.bf16.mxu0 0
      %324 = vmatpush2.bf16.msra.mxu0 0
      %325 = vmatprep.subr.bf16.mxu0 0
      %326 = vmatpush2.bf16.msra.mxu0 0
      %327 = vmatprep.subr.bf16.mxu0 0
      %328 = vmatpush2.bf16.msra.mxu0 0
      %329 = vmatprep.subr.bf16.mxu0 0
      %330 = vmatpush2.bf16.msra.mxu0 0
      %331 = vmatprep.subr.bf16.mxu0 0
      %332 = vmatpush2.bf16.msra.mxu0 0
      %333 = vmatprep.subr.bf16.mxu0 0
      %334 = vmatpush2.bf16.msra.mxu0 0
      %335 = vmatprep.mubr.bf16.mxu0 0
      %336 = vmatmul.mubr.bf16.gmra.mxu0 %v301
      %v337 = vpop.f32.mrf.mxu0
      %v338 = vadd.f32 %v285, %v337
      %v339 = vpop.f32.mrf.mxu0
      %v340 = vpop.f32.mrf.mxu0
      %v341 = vpop.f32.mrf.mxu0
      %342 = vdwg.mxu0
      %v343 = vpack.c.bf16 %v338, %v338
      %345 = vrot.lane.b32.xlu0 %v343, 96
      %v346 = vpop.permute.xlu0 %345
      %vm347 = vcmask 130048
      %v349 = vsel %vm347, %v343, 0
      %v352 = vsel %vm347, %v346, 0
      %354 = vmatprep.subr.bf16.mxu0 0
      %355 = vmatpush1.bf16.xpose.msra.mxu0 0
      %356 = vmatprep.subr.bf16.mxu0 0
      %357 = vmatpush1.bf16.xpose.msra.mxu0 0
      %358 = vmatprep.subr.bf16.mxu0 0
      %359 = vmatpush1.bf16.xpose.msra.mxu0 0
      %360 = vmatprep.subr.bf16.mxu0 0
      %361 = vmatpush1.bf16.xpose.msra.mxu0 0
      %362 = vmatprep.subr.bf16.mxu0 0
      %363 = vmatpush1.bf16.xpose.msra.mxu0 0
      %364 = vmatprep.subr.bf16.mxu0 0
      %365 = vmatpush1.bf16.xpose.msra.mxu0 0
      %366 = vmatprep.subr.bf16.mxu0 0
      %367 = vmatpush1.bf16.xpose.msra.mxu0 0
      %368 = vmatprep.subr.bf16.mxu0 0
      %369 = vmatpush1.bf16.xpose.msra.mxu0 %v352
      %370 = vmatprep.subr.bf16.mxu0 0
      %371 = vmatpush2.bf16.xpose.msra.mxu0 0
      %372 = vmatprep.subr.bf16.mxu0 0
      %373 = vmatpush2.bf16.xpose.msra.mxu0 0
      %374 = vmatprep.subr.bf16.mxu0 0
      %375 = vmatpush2.bf16.xpose.msra.mxu0 0
      %376 = vmatprep.subr.bf16.mxu0 0
      %377 = vmatpush2.bf16.xpose.msra.mxu0 0
      %378 = vmatprep.subr.bf16.mxu0 0
      %379 = vmatpush2.bf16.xpose.msra.mxu0 0
      %380 = vmatprep.subr.bf16.mxu0 0
      %381 = vmatpush2.bf16.xpose.msra.mxu0 0
      %382 = vmatprep.subr.bf16.mxu0 0
      %383 = vmatpush2.bf16.xpose.msra.mxu0 0
      %384 = vmatprep.subr.bf16.mxu0 0
      %385 = vmatpush2.bf16.xpose.msra.mxu0 0
      %386 = vmatprep.mubr.bf16.mxu0 0
      %387 = vmatmul.mubr.bf16.gmra.mxu0 %v349
      %v388 = vpop.f32.mrf.mxu0
      %v389 = vadd.f32 0.0, %v388
      %v390 = vpop.f32.mrf.mxu0
      %v391 = vpop.f32.mrf.mxu0
      %v392 = vpop.f32.mrf.mxu0
      %393 = vdwg.mxu0
      %v394 = vmul.f32 %v389, 0.25
      %vm395 = vcmask 64512
      %v396 = vsel %vm395, %v394, -inf
      %397 = vmax.xlane.f32.xlu0 %v396
      %v398 = vpop.xlane.xlu0 %397
      %v399 = vsub.f32 %v394, %v398
      %v400 = vmul.f32 %v399, 1.442695
      %v401 = vpow.pop %v400
      %v402 = vsel %vm395, %v401, 0.0
      %403 = vadd.xlane.f32.xlu0 %v402
      %v404 = vpop.xlane.xlu0 %403
      %v405 = vrcp.pop %v404
      %v406 = vmul.f32 %v401, %v405
      %v407 = vpack.c.bf16 %v406, %v406
      %408 = vrot.lane.b32.xlu0 %v343, 64
      %v409 = vpop.permute.xlu0 %408
      %v411 = vsel %vm395, %v407, 0
      %vm413 = vcmask 1043456
      %v415 = vsel %vm413, %v409, 0
      %417 = vmatprep.subr.bf16.mxu0 0
      %418 = vmatpush1.bf16.msra.mxu0 0
      %419 = vmatprep.subr.bf16.mxu0 0
      %420 = vmatpush1.bf16.msra.mxu0 0
      %421 = vmatprep.subr.bf16.mxu0 0
      %422 = vmatpush1.bf16.msra.mxu0 0
      %423 = vmatprep.subr.bf16.mxu0 0
      %424 = vmatpush1.bf16.msra.mxu0 0
      %425 = vmatprep.subr.bf16.mxu0 0
      %426 = vmatpush1.bf16.msra.mxu0 0
      %427 = vmatprep.subr.bf16.mxu0 0
      %428 = vmatpush1.bf16.msra.mxu0 0
      %429 = vmatprep.subr.bf16.mxu0 0
      %430 = vmatpush1.bf16.msra.mxu0 0
      %431 = vmatprep.subr.bf16.mxu0 0
      %432 = vmatpush1.bf16.msra.mxu0 %v415
      %433 = vmatprep.subr.bf16.mxu0 0
      %434 = vmatpush2.bf16.msra.mxu0 0
      %435 = vmatprep.subr.bf16.mxu0 0
      %436 = vmatpush2.bf16.msra.mxu0 0
      %437 = vmatprep.subr.bf16.mxu0 0
      %438 = vmatpush2.bf16.msra.mxu0 0
      %439 = vmatprep.subr.bf16.mxu0 0
      %440 = vmatpush2.bf16.msra.mxu0 0
      %441 = vmatprep.subr.bf16.mxu0 0
      %442 = vmatpush2.bf16.msra.mxu0 0
      %443 = vmatprep.subr.bf16.mxu0 0
      %444 = vmatpush2.bf16.msra.mxu0 0
      %445 = vmatprep.subr.bf16.mxu0 0
      %446 = vmatpush2.bf16.msra.mxu0 0
      %447 = vmatprep.subr.bf16.mxu0 0
      %448 = vmatpush2.bf16.msra.mxu0 0
      %449 = vmatprep.mubr.bf16.mxu0 0
      %450 = vmatmul.mubr.bf16.gmra.mxu0 %v411
      %v451 = vpop.f32.mrf.mxu0
      %v452 = vadd.f32 0.0, %v451
      %v453 = vpop.f32.mrf.mxu0
      %v454 = vpop.f32.mrf.mxu0
      %v455 = vpop.f32.mrf.mxu0
      %456 = vdwg.mxu0
      %457 = vrot.lane.b32.xlu0 %v343, 112
      %v458 = vpop.permute.xlu0 %457
      %459 = vrot.lane.b32.xlu0 %v343, 80
      %v460 = vpop.permute.xlu0 %459
      %v462 = vsel %vm347, %v458, 0
      %v465 = vsel %vm347, %v460, 0
      %467 = vmatprep.subr.bf16.mxu0 0
      %468 = vmatpush1.bf16.xpose.msra.mxu0 0
      %469 = vmatprep.subr.bf16.mxu0 0
      %470 = vmatpush1.bf16.xpose.msra.mxu0 0
      %471 = vmatprep.subr.bf16.mxu0 0
      %472 = vmatpush1.bf16.xpose.msra.mxu0 0
      %473 = vmatprep.subr.bf16.mxu0 0
      %474 = vmatpush1.bf16.xpose.msra.mxu0 0
      %475 = vmatprep.subr.bf16.mxu0 0
      %476 = vmatpush1.bf16.xpose.msra.mxu0 0
      %477 = vmatprep.subr.bf16.mxu0 0
      %478 = vmatpush1.bf16.xpose.msra.mxu0 0
      %479 = vmatprep.subr.bf16.mxu0 0
      %480 = vmatpush1.bf16.xpose.msra.mxu0 0
      %481 = vmatprep.subr.bf16.mxu0 0
      %482 = vmatpush1.bf16.xpose.msra.mxu0 %v465
      %483 = vmatprep.subr.bf16.mxu0 0
      %484 = vmatpush2.bf16.xpose.msra.mxu0 0
      %485 = vmatprep.subr.bf16.mxu0 0
      %486 = vmatpush2.bf16.xpose.msra.mxu0 0
      %487 = vmatprep.subr.bf16.mxu0 0
      %488 = vmatpush2.bf16.xpose.msra.mxu0 0
      %489 = vmatprep.subr.bf16.mxu0 0
      %490 = vmatpush2.bf16.xpose.msra.mxu0 0
      %491 = vmatprep.subr.bf16.mxu0 0
      %492 = vmatpush2.bf16.xpose.msra.mxu0 0
      %493 = vmatprep.subr.bf16.mxu0 0
      %494 = vmatpush2.bf16.xpose.msra.mxu0 0
      %495 = vmatprep.subr.bf16.mxu0 0
      %496 = vmatpush2.bf16.xpose.msra.mxu0 0
      %497 = vmatprep.subr.bf16.mxu0 0
      %498 = vmatpush2.bf16.xpose.msra.mxu0 0
      %499 = vmatprep.mubr.bf16.mxu0 0
      %500 = vmatmul.mubr.bf16.gmra.mxu0 %v462
      %v501 = vpop.f32.mrf.mxu0
      %v502 = vadd.f32 0.0, %v501
      %v503 = vpop.f32.mrf.mxu0
      %v504 = vpop.f32.mrf.mxu0
      %v505 = vpop.f32.mrf.mxu0
      %506 = vdwg.mxu0
      %v507 = vmul.f32 %v502, 0.25
      %v508 = vsel %vm395, %v507, -inf
      %509 = vmax.xlane.f32.xlu0 %v508
      %v510 = vpop.xlane.xlu0 %509
      %v511 = vsub.f32 %v507, %v510
      %v512 = vmul.f32 %v511, 1.442695
      %v513 = vpow.pop %v512
      %v514 = vsel %vm395, %v513, 0.0
      %515 = vadd.xlane.f32.xlu0 %v514
      %v516 = vpop.xlane.xlu0 %515
      %v517 = vrcp.pop %v516
      %v518 = vmul.f32 %v513, %v517
      %v519 = vpack.c.bf16 %v518, %v518
      %520 = vrot.lane.b32.xlu0 %v343, 48
      %v521 = vpop.permute.xlu0 %520
      %v523 = vsel %vm395, %v519, 0
      %v526 = vsel %vm413, %v521, 0
      %528 = vmatprep.subr.bf16.mxu0 0
      %529 = vmatpush1.bf16.msra.mxu0 0
      %530 = vmatprep.subr.bf16.mxu0 0
      %531 = vmatpush1.bf16.msra.mxu0 0
      %532 = vmatprep.subr.bf16.mxu0 0
      %533 = vmatpush1.bf16.msra.mxu0 0
      %534 = vmatprep.subr.bf16.mxu0 0
      %535 = vmatpush1.bf16.msra.mxu0 0
      %536 = vmatprep.subr.bf16.mxu0 0
      %537 = vmatpush1.bf16.msra.mxu0 0
      %538 = vmatprep.subr.bf16.mxu0 0
      %539 = vmatpush1.bf16.msra.mxu0 0
      %540 = vmatprep.subr.bf16.mxu0 0
      %541 = vmatpush1.bf16.msra.mxu0 0
      %542 = vmatprep.subr.bf16.mxu0 0
      %543 = vmatpush1.bf16.msra.mxu0 %v526
      %544 = vmatprep.subr.bf16.mxu0 0
      %545 = vmatpush2.bf16.msra.mxu0 0
      %546 = vmatprep.subr.bf16.mxu0 0
      %547 = vmatpush2.bf16.msra.mxu0 0
      %548 = vmatprep.subr.bf16.mxu0 0
      %549 = vmatpush2.bf16.msra.mxu0 0
      %550 = vmatprep.subr.bf16.mxu0 0
      %551 = vmatpush2.bf16.msra.mxu0 0
      %552 = vmatprep.subr.bf16.mxu0 0
      %553 = vmatpush2.bf16.msra.mxu0 0
      %554 = vmatprep.subr.bf16.mxu0 0
      %555 = vmatpush2.bf16.msra.mxu0 0
      %556 = vmatprep.subr.bf16.mxu0 0
      %557 = vmatpush2.bf16.msra.mxu0 0
      %558 = vmatprep.subr.bf16.mxu0 0
      %559 = vmatpush2.bf16.msra.mxu0 0
      %560 = vmatprep.mubr.bf16.mxu0 0
      %561 = vmatmul.mubr.bf16.gmra.mxu0 %v523
      %v562 = vpop.f32.mrf.mxu0
      %v563 = vadd.f32 0.0, %v562
      %v564 = vpop.f32.mrf.mxu0
      %v565 = vpop.f32.mrf.mxu0
      %v566 = vpop.f32.mrf.mxu0
      %567 = vdwg.mxu0
      %569 = vrot.lane.b32.xlu0 %v563, 16
      %v570 = vpop.permute.xlu0 %569
      %v572 = vsel %vm347, %v452, %v570
      %v573 = vpack.c.bf16 %v572, %v572
      %v574 = vld [vmem:[%s3] sm:$0xf]
      %v575 = vld [vmem:[%s3 + $0x4] sm:$0xf]
      %v576 = vld [vmem:[%s3 + $0x8] sm:$0xf]
      %v577 = vld [vmem:[%s3 + $0xc] sm:$0xf]
      %v578 = vld [vmem:[%s4] sm:$0x1]
      %v580 = vlaneseq
      %v581 = vshrl.u32 %v580, 7
      %v582 = vsub.s32 0, %v581
      %v583 = vrot.slane %v578, %v582
      %v589 = vunpack.c.l.b16 %v574
      %v590 = vunpack.c.l.b16 %v575
      %v591 = vunpack.c.l.b16 %v576
      %v592 = vunpack.c.l.b16 %v577
      %v593 = vpack.c.b16 %v590, %v589
      %v594 = vpack.c.b16 %v592, %v591
      %v598 = vsel %vm299, %v573, 0
      %600 = vmatprep.subr.bf16.mxu0 0
      %601 = vmatpush1.bf16.msra.mxu0 0
      %602 = vmatprep.subr.bf16.mxu0 0
      %603 = vmatpush1.bf16.msra.mxu0 0
      %604 = vmatprep.subr.bf16.mxu0 0
      %605 = vmatpush1.bf16.msra.mxu0 0
      %606 = vmatprep.subr.bf16.mxu0 0
      %607 = vmatpush1.bf16.msra.mxu0 0
      %608 = vmatprep.subr.bf16.mxu0 0
      %609 = vmatpush1.bf16.msra.mxu0 0
      %610 = vmatprep.subr.bf16.mxu0 0
      %611 = vmatpush1.bf16.msra.mxu0 0
      %612 = vmatprep.subr.bf16.mxu0 0
      %613 = vmatpush1.bf16.msra.mxu0 %v594
      %614 = vmatprep.subr.bf16.mxu0 0
      %615 = vmatpush1.bf16.msra.mxu0 %v593
      %616 = vmatprep.subr.bf16.mxu0 0
      %617 = vmatpush2.bf16.msra.mxu0 0
      %618 = vmatprep.subr.bf16.mxu0 0
      %619 = vmatpush2.bf16.msra.mxu0 0
      %620 = vmatprep.subr.bf16.mxu0 0
      %621 = vmatpush2.bf16.msra.mxu0 0
      %622 = vmatprep.subr.bf16.mxu0 0
      %623 = vmatpush2.bf16.msra.mxu0 0
      %624 = vmatprep.subr.bf16.mxu0 0
      %625 = vmatpush2.bf16.msra.mxu0 0
      %626 = vmatprep.subr.bf16.mxu0 0
      %627 = vmatpush2.bf16.msra.mxu0 0
      %628 = vmatprep.subr.bf16.mxu0 0
      %629 = vmatpush2.bf16.msra.mxu0 0
      %630 = vmatprep.subr.bf16.mxu0 0
      %631 = vmatpush2.bf16.msra.mxu0 0
      %632 = vmatprep.mubr.bf16.mxu0 0
      %633 = vmatmul.mubr.bf16.gmra.mxu0 %v598
      %v634 = vpop.f32.mrf.mxu0
      %v635 = vadd.f32 %v583, %v634
      %v636 = vpop.f32.mrf.mxu0
      %v637 = vpop.f32.mrf.mxu0
      %v638 = vpop.f32.mrf.mxu0
      %639 = vdwg.mxu0
      %v640 = vunpack.c.l.bf16 %v275
      %v641 = vadd.f32 %v635, %v640
      %v642 = vld [vmem:[%s5] sm:$0x1]
      %v643 = vld [vmem:[%s6] sm:$0x1]
      %v644 = vsel %vm299, %v641, 0.0
      %645 = vadd.xlane.f32.xlu0 %v644
      %v646 = vpop.xlane.xlu0 %645
      %v647 = vrcp.pop 32.0
      %v648 = vmul.f32 %v646, %v647
      %v649 = vsub.f32 %v641, %v648
      %v650 = vmul.f32 %v649, %v649
      %v651 = vsel %vm299, %v650, 0.0
      %652 = vadd.xlane.f32.xlu0 %v651
      %v653 = vpop.xlane.xlu0 %652
      %v654 = vmul.f32 %v653, %v647
      %v655 = vadd.f32 %v654, 1e-12
      %v656 = vrsqrt.pop %v655
      %v657 = vmul.f32 %v649, %v656
      %v659 = vlaneseq
      %v660 = vshrl.u32 %v659, 7
      %v661 = vsub.s32 0, %v660
      %v662 = vrot.slane %v642, %v661
      %v664 = vmul.f32 %v657, %v662
      %v666 = vlaneseq
      %v667 = vshrl.u32 %v666, 7
      %v668 = vsub.s32 0, %v667
      %v669 = vrot.slane %v643, %v668
      %v671 = vadd.f32 %v664, %v669
      %v672 = vpack.c.bf16 %v671, %v671
      %vm673 = vcmask 257024
      %674 = vst.msk [vmem:[%s273] sm:$0xf] %vm673, %v672
      %p675 = scmp.lt.s32.totalorder %s18, 1
      %s676 = scalar_select %p675, %s18, 1
      %s677 = smul.addr %s676, 4
      %s678 = scalar_lea.vmem %s7, %s677
      // Predicated region
      $region49: #{bert_classifier_forward.7} parent=47 // pred_check
        %p679 = pneg %p188
      $region50: #{bert_classifier_forward.7} parent=47 // pred_check_branch
        %681 = sbr.rel (%p679) target = $region52
      $region51: #{bert_classifier_forward.7} parent=47 // pred_region
        _
      $region52: #{bert_classifier_forward.7} parent=47 // pred_fallthru
        _
    $region48: #{bert_classifier_forward.7} parent=5 // pred_fallthru
      _
    %p682 = scmp.le.s32.totalorder 2, %s13
    // Predicated region
    $region53: #{bert_classifier_forward.7} parent=5 // pred_check
      %p683 = pneg %p682
    $region54: #{bert_classifier_forward.7} parent=5 // pred_check_branch
      %685 = sbr.rel (%p683) target = $region56
    $region55: #{bert_classifier_forward.7} parent=5 // pred_region
      %s686 = ssub.s32 %s13, 2
      // Predicated region
      $region57: #{bert_classifier_forward.7} parent=55 // pred_check
        %p687 = pneg %p194
      $region58: #{bert_classifier_forward.7} parent=55 // pred_check_branch
        %689 = sbr.rel (%p687) target = $region60
      $region59: #{bert_classifier_forward.7} parent=55 // pred_region
        %p690 = scmp.lt.s32.totalorder %s19, 1
        %s691 = scalar_select %p690, %s19, 1
        %s692 = smul.addr %s691, 4
        %s693 = scalar_lea.vmem %s7, %s692
      $region60: #{bert_classifier_forward.7} parent=55 // pred_fallthru
        _
    $region56: #{bert_classifier_forward.7} parent=5 // pred_fallthru
      _
  $region6: #{bert_classifier_forward.7} parent=0 // loop_footer
    %s17 = sadd.s32 1, %s13
  $region7: #{bert_classifier_forward.7} parent=0 // loop_footer_branch
    %12 = sbr.rel target = $region3
  $region8: #{bert_classifier_forward.7} parent=0 // loop_exit
    _

</llo_original>
